<compile_context>
chip_gen: v7x
topology: tpu7x:2x2x1
jax: 0.10.0
libtpu: 0.0.40
codegen_flags: <defaults>
</compile_context>

<pallas_src>
import math
import functools

import jax
import jax.numpy as jnp
from jax import lax
from jax.experimental import pallas as pl
from jax.experimental.pallas import tpu as pltpu

EPS = 1e-5
NEG_INF = -1e30


def _layernorm(x, w, b):
    mu = jnp.mean(x, axis=-1, keepdims=True)
    var = jnp.mean((x - mu) ** 2, axis=-1, keepdims=True)
    return (x - mu) * lax.rsqrt(var + EPS) * w + b


def _gelu_exact(x):
    # PyTorch nn.GELU() default = exact erf formulation.
    return 0.5 * x * (1.0 + lax.erf(x * jnp.float32(1.0 / math.sqrt(2.0))))


def _vmem_limit(resident_bytes):
    # Explicit scoped-VMEM limit: cover the resident set with headroom, never exceed
    # v7x's 64 MiB physical VMEM, never shrink below the 32 MiB v6e default.
    return int(min(max(resident_bytes + (4 << 20), 32 << 20), 64 << 20))


# ---------------- kernel 1: LN1 + fused QKV projection ----------------------
def ln_qkv_kernel(x_ref, ln1w_ref, ln1b_ref, wqkv_ref, bqkv_ref,
                  q_ref, k_ref, v_ref):
    H = q_ref.shape[1]
    hd = q_ref.shape[3]
    x = x_ref[0].astype(jnp.float32)                                    # (tq, D)
    h1 = _layernorm(x, ln1w_ref[...], ln1b_ref[...])
    qkv = jnp.dot(h1.astype(wqkv_ref.dtype), wqkv_ref[...],
                  preferred_element_type=jnp.float32) + bqkv_ref[...]   # (tq, 3D) f32
    qkv = qkv.astype(q_ref.dtype)
    # Write Q/K/V head-major directly: static lane slices -> static per-head stores.
    out_refs = (q_ref, k_ref, v_ref)
    for t in range(3):
        for h in range(H):
            c0 = (t * H + h) * hd
            out_refs[t][0, h] = qkv[:, c0:c0 + hd]


# -------- kernel 2: flash attention + out-proj + residuals + MLP ------------
def attn_mlp_kernel(x_ref, q_ref, k_ref, v_ref,
                    wo_ref, bo_ref, ln2w_ref, ln2b_ref,
                    w1_ref, b1_ref, w2_ref, b2_ref,
                    out_ref,
                    m_scr, l_scr, acc_scr,
                    *, causal):
    qi = pl.program_id(1)
    ki = pl.program_id(2)
    nk = pl.num_programs(2)
    tq = q_ref.shape[2]
    tk = k_ref.shape[2]

    @pl.when(ki == 0)
    def _init():
        m_scr[...] = jnp.full(m_scr.shape, -jnp.inf, m_scr.dtype)
        l_scr[...] = jnp.zeros(l_scr.shape, l_scr.dtype)
        acc_scr[...] = jnp.zeros(acc_scr.shape, acc_scr.dtype)

    def _accumulate(masked):
        q = q_ref[0]                                    # (H, tq, hd) bf16 (scale folded)
        k = k_ref[0]                                    # (H, tk, hd) bf16
        v = v_ref[0]                                    # (H, tk, hd) bf16
        s = lax.dot_general(q, k, (((2,), (2,)), ((0,), (0,))),
                            preferred_element_type=jnp.float32)        # (H, tq, tk) f32
        if masked:
            row = qi * tq + lax.broadcasted_iota(jnp.int32, s.shape, 1)
            col = ki * tk + lax.broadcasted_iota(jnp.int32, s.shape, 2)
            s = jnp.where(col > row, jnp.float32(NEG_INF), s)
        m_prev = m_scr[...]
        m_new = jnp.maximum(m_prev, jnp.max(s, axis=-1, keepdims=True))
        alpha = jnp.exp(m_prev - m_new)
        p = jnp.exp(s - m_new)
        l_scr[...] = alpha * l_scr[...] + jnp.sum(p, axis=-1, keepdims=True)
        pv = lax.dot_general(p.astype(v.dtype), v, (((2,), (1,)), ((0,), (0,))),
                             preferred_element_type=jnp.float32)       # (H, tq, hd)
        acc_scr[...] = alpha * acc_scr[...] + pv
        m_scr[...] = m_new

    if causal:
        # KV tiles entirely above the diagonal contribute nothing: compute is skipped
        # here and their DMA is skipped via the clamped K/V index_map in the wrapper.
        active = ki * tk <= qi * tq + (tq - 1)
        # Only diagonal-straddling tiles need the (iota/compare/select) mask.
        straddle = ki * tk + (tk - 1) > qi * tq
        pl.when(jnp.logical_and(active, straddle))(lambda: _accumulate(True))
        pl.when(jnp.logical_and(active, jnp.logical_not(straddle)))(
            lambda: _accumulate(False))
    else:
        _accumulate(False)

    @pl.when(ki == nk - 1)
    def _finalize():
        H = acc_scr.shape[0]
        inv_l = pl.reciprocal(l_scr[...], approx=True)                 # EUP
        attn = acc_scr[...] * inv_l                                    # (H, tq, hd) f32
        # Concatenate heads along lanes -> one (tq, D) @ (D, D) out-projection matmul.
        attn2d = jnp.concatenate([attn[h] for h in range(H)], axis=-1)  # (tq, D)
        o = jnp.dot(attn2d.astype(wo_ref.dtype), wo_ref[...],
                    preferred_element_type=jnp.float32) + bo_ref[...]  # (tq, D)
        x = x_ref[0].astype(jnp.float32)                               # (tq, D)
        x1 = x + o                                                     # residual 1
        h2 = _layernorm(x1, ln2w_ref[...], ln2b_ref[...])
        u = jnp.dot(h2.astype(w1_ref.dtype), w1_ref[...],
                    preferred_element_type=jnp.float32) + b1_ref[...]  # (tq, 4D)
        u = _gelu_exact(u)
        m = jnp.dot(u.astype(w2_ref.dtype), w2_ref[...],
                    preferred_element_type=jnp.float32) + b2_ref[...]  # (tq, D)
        out_ref[0] = (x1 + m).astype(out_ref.dtype)                    # residual 2


# ------------------------------ wrapper --------------------------------------
def transformer_block(x, params, *, num_heads, causal=True,
                      q_tile=256, kv_tile=256):
    (ln1w, ln1b, wqkv, bqkv, wo, bo, ln2w, ln2b, w1, b1, w2, b2) = params
    B, S, D = x.shape
    assert D % num_heads == 0, "dim must be divisible by num_heads"
    hd = D // num_heads
    H = num_heads
    tq = min(q_tile, S)
    tk = min(kv_tile, S)
    # TODO(synk): pad S to a tile multiple to support ragged sequence lengths (then a
    # fully-masked row needs an explicit l==0 fallback in the softmax finalize).
    assert S % tq == 0 and S % tk == 0, "seq len must be a multiple of the tiles"
    nq, nk = S // tq, S // tk
    f32, bf16 = jnp.float32, jnp.bfloat16
    scale = 1.0 / math.sqrt(hd)
    xb = x.dtype.itemsize

    # Pre-transpose every weight to (in, out) so in-kernel matmuls are straight MXU
    # feeds; fold the softmax 1/sqrt(hd) scale into the q projection (weights + bias).
    scale_vec = jnp.concatenate(
        [jnp.full((D,), scale, f32), jnp.ones((2 * D,), f32)])
    wqkv_t = (wqkv.astype(f32).T * scale_vec[None, :]).astype(bf16)     # (D, 3D)
    bqkv_s = (bqkv.astype(f32) * scale_vec).reshape(1, 3 * D)
    wo_t = wo.astype(f32).T.astype(bf16)                                # (D, D)
    w1_t = w1.astype(f32).T.astype(bf16)                                # (D, 4D)
    w2_t = w2.astype(f32).T.astype(bf16)                                # (4D, D)

    ln1w2 = ln1w.reshape(1, D).astype(f32)
    ln1b2 = ln1b.reshape(1, D).astype(f32)
    ln2w2 = ln2w.reshape(1, D).astype(f32)
    ln2b2 = ln2b.reshape(1, D).astype(f32)
    bo2 = bo.reshape(1, D).astype(f32)
    b12 = b1.reshape(1, 4 * D).astype(f32)
    b22 = b2.reshape(1, D).astype(f32)

    # ---- kernel 1: LN1 + fused QKV projection, head-major Q/K/V outputs ------
    # TODO(synk): for very large D on v7x, tile the 3D output columns (stream Wqkv in
    # (D, tn) slabs) instead of keeping the full (D,3D) weight resident.
    k1_resident = (tq * D * xb + 2 * D * 4            # x tile + ln params
                   + D * 3 * D * 2 + 3 * D * 4        # Wqkv bf16 + bias
                   + 3 * tq * D * 2)                  # q/k/v output tiles bf16
    q, k, v = pl.pallas_call(
        ln_qkv_kernel,
        out_shape=(jax.ShapeDtypeStruct((B, H, S, hd), bf16),
                   jax.ShapeDtypeStruct((B, H, S, hd), bf16),
                   jax.ShapeDtypeStruct((B, H, S, hd), bf16)),
        grid_spec=pltpu.PrefetchScalarGridSpec(
            num_scalar_prefetch=0,
            grid=(B, nq),
            in_specs=[
                pl.BlockSpec((1, tq, D), lambda b, i: (b, i, 0)),        # x
                pl.BlockSpec((1, D), lambda b, i: (0, 0)),               # ln1 w
                pl.BlockSpec((1, D), lambda b, i: (0, 0)),               # ln1 b
                pl.BlockSpec((D, 3 * D), lambda b, i: (0, 0)),           # Wqkv^T
                pl.BlockSpec((1, 3 * D), lambda b, i: (0, 0)),           # bqkv
            ],
            out_specs=[
                pl.BlockSpec((1, H, tq, hd), lambda b, i: (b, 0, i, 0)),  # q
                pl.BlockSpec((1, H, tq, hd), lambda b, i: (b, 0, i, 0)),  # k
                pl.BlockSpec((1, H, tq, hd), lambda b, i: (b, 0, i, 0)),  # v
            ],
        ),
        compiler_params=pltpu.CompilerParams(
            dimension_semantics=("parallel", "parallel"),
            vmem_limit_bytes=_vmem_limit(2 * k1_resident)),
        cost_estimate=pl.CostEstimate(
            flops=2 * B * S * D * 3 * D,
            transcendentals=B * S,
            bytes_accessed=B * S * D * xb + D * 3 * D * 2 + 3 * D * 4
                           + 2 * D * 4 + 3 * B * S * D * 2),
    )(x, ln1w2, ln1b2, wqkv_t, bqkv_s)

    # ---- kernel 2: flash attention + out-proj + residuals + MLP --------------
    if causal:
        # Clamp the KV block index at the last tile touching the diagonal: skipped
        # steps repeat the previous block index, so no K/V DMA is issued for them.
        kv_index_map = lambda b, i, j: (b, 0, jnp.minimum(j, (i * tq + tq - 1) // tk), 0)
    else:
        kv_index_map = lambda b, i, j: (b, 0, j, 0)

    # TODO(synk): on v7x large-D, stream W1/W2 (and Wo) instead of keeping them resident
    # for every KV step (split out-proj+LN2+MLP into a third kernel or emit_pipeline),
    # and single-buffer grid-invariant weight specs via pipeline_mode=pl.Buffered(1).
    k2_resident = (tq * D * xb                        # x tile
                   + tq * D * 2 + 2 * tk * D * 2      # q + k + v tiles (bf16)
                   + (1 + 4 + 4) * D * D * 2          # Wo, W1, W2 (bf16)
                   + 9 * D * 4                        # biases / ln params (f32)
                   + tq * D * xb)                     # output tile
    k2_scratch = 2 * H * tq * 4 + H * tq * hd * 4
    attn_flops = (2 if causal else 4) * S * S * D
    flops2 = B * (attn_flops + 18 * S * D * D)
    kv_bytes = 2 * B * S * D * 2 * nq                 # K/V re-read once per q tile
    if causal:
        kv_bytes //= 2                                # DMA-skip drops ~half the tiles
    bytes2 = (B * S * D * (2 * xb) + B * S * D * 2 + kv_bytes
              + (1 + 4 + 4) * D * D * 2 + 11 * D * 4)
    out = pl.pallas_call(
        functools.partial(attn_mlp_kernel, causal=causal),
        out_shape=jax.ShapeDtypeStruct((B, S, D), x.dtype),
        grid_spec=pltpu.PrefetchScalarGridSpec(
            num_scalar_prefetch=0,
            grid=(B, nq, nk),
            in_specs=[
                pl.BlockSpec((1, tq, D), lambda b, i, j: (b, i, 0)),         # x
                pl.BlockSpec((1, H, tq, hd), lambda b, i, j: (b, 0, i, 0)),  # q
                pl.BlockSpec((1, H, tk, hd), kv_index_map),                  # k
                pl.BlockSpec((1, H, tk, hd), kv_index_map),                  # v
                pl.BlockSpec((D, D), lambda b, i, j: (0, 0)),                # Wo^T
                pl.BlockSpec((1, D), lambda b, i, j: (0, 0)),                # bo
                pl.BlockSpec((1, D), lambda b, i, j: (0, 0)),                # ln2 w
                pl.BlockSpec((1, D), lambda b, i, j: (0, 0)),                # ln2 b
                pl.BlockSpec((D, 4 * D), lambda b, i, j: (0, 0)),            # W1^T
                pl.BlockSpec((1, 4 * D), lambda b, i, j: (0, 0)),            # b1
                pl.BlockSpec((4 * D, D), lambda b, i, j: (0, 0)),            # W2^T
                pl.BlockSpec((1, D), lambda b, i, j: (0, 0)),                # b2
            ],
            out_specs=pl.BlockSpec((1, tq, D), lambda b, i, j: (b, i, 0)),
            scratch_shapes=[
                pltpu.VMEM((H, tq, 1), f32),     # running max
                pltpu.VMEM((H, tq, 1), f32),     # running sum
                pltpu.VMEM((H, tq, hd), f32),    # attention accumulator
            ],
        ),
        compiler_params=pltpu.CompilerParams(
            dimension_semantics=("parallel", "parallel", "arbitrary"),
            vmem_limit_bytes=_vmem_limit(2 * k2_resident + k2_scratch)),
        cost_estimate=pl.CostEstimate(
            flops=flops2,
            transcendentals=B * H * S * S // (2 if causal else 1)
                            + B * S * 4 * D + B * S,
            bytes_accessed=bytes2),
    )(x, q, k, v, wo_t, bo2, ln2w2, ln2b2, w1_t, b12, w2_t, b22)
    return out


# ---------------------- pure-JAX reference (for checking) --------------------
def transformer_block_ref(x, params, *, num_heads, causal=True):
    (ln1w, ln1b, wqkv, bqkv, wo, bo, ln2w, ln2b, w1, b1, w2, b2) = params
    B, S, D = x.shape
    hd = D // num_heads

    def ln(v, w, b):
        mu = jnp.mean(v, axis=-1, keepdims=True)
        var = jnp.mean((v - mu) ** 2, axis=-1, keepdims=True)
        return (v - mu) * lax.rsqrt(var + EPS) * w + b

    h1 = ln(x, ln1w, ln1b)
    qkv = jnp.einsum('bsd,ed->bse', h1, wqkv) + bqkv
    q, k, v = jnp.split(qkv, 3, axis=-1)
    q = q.reshape(B, S, num_heads, hd)
    k = k.reshape(B, S, num_heads, hd)
    v = v.reshape(B, S, num_heads, hd)
    s = jnp.einsum('bqhd,bkhd->bhqk', q, k) / math.sqrt(hd)
    if causal:
        mask = jnp.triu(jnp.ones((S, S), bool), k=1)
        s = jnp.where(mask[None, None], -1e30, s)
    p = jax.nn.softmax(s, axis=-1)
    o = jnp.einsum('bhqk,bkhd->bqhd', p, v).reshape(B, S, D)
    o = jnp.einsum('bsd,ed->bse', o, wo) + bo
    x1 = x + o
    h2 = ln(x1, ln2w, ln2b)
    u = jnp.einsum('bsd,ed->bse', h2, w1) + b1
    u = 0.5 * u * (1.0 + lax.erf(u / math.sqrt(2.0)))
    m = jnp.einsum('bse,de->bsd', u, w2) + b2
    return x1 + m


if __name__ == "__main__":
    # Small but TPU-friendly shapes: hd = 128 (lane-dense head tiles); 128-tiles over
    # S=256 give a 2x2 q/kv grid so the online-softmax, causal DMA-skip (above-diag
    # tile), masked (diag-straddling) and unmasked (below-diag) branches are all hit.
    B, S, D, H = 2, 256, 256, 2

    key = jax.random.PRNGKey(0)
    ks = jax.random.split(key, 16)
    f32 = jnp.float32

    x = jax.random.normal(ks[0], (B, S, D), dtype=f32)

    params = (
        jnp.ones((D,), f32),                                       # ln1 weight
        jnp.zeros((D,), f32),                                      # ln1 bias
        0.05 * jax.random.normal(ks[1], (3 * D, D), dtype=f32),    # in_proj_weight
        0.01 * jax.random.normal(ks[2], (3 * D,), dtype=f32),      # in_proj_bias
        0.05 * jax.random.normal(ks[3], (D, D), dtype=f32),        # out_proj.weight
        0.01 * jax.random.normal(ks[4], (D,), dtype=f32),          # out_proj.bias
        jnp.ones((D,), f32),                                       # ln2 weight
        jnp.zeros((D,), f32),                                      # ln2 bias
        0.05 * jax.random.normal(ks[5], (4 * D, D), dtype=f32),    # mlp.0.weight
        0.01 * jax.random.normal(ks[6], (4 * D,), dtype=f32),      # mlp.0.bias
        0.05 * jax.random.normal(ks[7], (D, 4 * D), dtype=f32),    # mlp.2.weight
        0.01 * jax.random.normal(ks[8], (D,), dtype=f32),          # mlp.2.bias
    )

    out = transformer_block(x, params, num_heads=H, causal=True,
                            q_tile=128, kv_tile=128)
    out = jax.block_until_ready(out)

    ref = transformer_block_ref(x, params, num_heads=H, causal=True)
    assert out.shape == (B, S, D)
    err = float(jnp.max(jnp.abs(out - ref)))
    # bf16 MXU operands (f32 accumulation) + approx reciprocal -> bf16-level tolerance.
    assert err < 5e-2, f"mismatch vs reference: max abs err = {err}"

    print("KERNEL_OK")
</pallas_src>

<mosaic_0001>
module attributes {stable_mosaic.version = 11 : i64} {
  func.func @ln_qkv_kernel(%arg0: i32, %arg1: i32, %arg2: memref<1x128x256xf32, #tpu.memory_space<vmem>>, %arg3: memref<1x256xf32, #tpu.memory_space<vmem>>, %arg4: memref<1x256xf32, #tpu.memory_space<vmem>>, %arg5: memref<256x768xbf16, #tpu.memory_space<vmem>>, %arg6: memref<1x768xf32, #tpu.memory_space<vmem>>, %arg7: memref<1x2x128x128xbf16, #tpu.memory_space<vmem>>, %arg8: memref<1x2x128x128xbf16, #tpu.memory_space<vmem>>, %arg9: memref<1x2x128x128xbf16, #tpu.memory_space<vmem>>) attributes {dimension_semantics = [#tpu.dimension_semantics<parallel>, #tpu.dimension_semantics<parallel>], iteration_bounds = array<i64: 2, 2>, scalar_prefetch = 0 : i64, scratch_operands = 0 : i64, tpu.core_type = #tpu.core_type<tc>, window_params = [{transform_indices = @transform_0, window_bounds = array<i64: 1, 128, 256>}, {pipeline_mode = #tpu.pipeline_mode<synchronous>, transform_indices = @transform_1, window_bounds = array<i64: 1, 256>}, {pipeline_mode = #tpu.pipeline_mode<synchronous>, transform_indices = @transform_2, window_bounds = array<i64: 1, 256>}, {pipeline_mode = #tpu.pipeline_mode<synchronous>, transform_indices = @transform_3, window_bounds = array<i64: 256, 768>}, {pipeline_mode = #tpu.pipeline_mode<synchronous>, transform_indices = @transform_4, window_bounds = array<i64: 1, 768>}, {transform_indices = @transform_5, window_bounds = array<i64: 1, 2, 128, 128>}, {transform_indices = @transform_6, window_bounds = array<i64: 1, 2, 128, 128>}, {transform_indices = @transform_7, window_bounds = array<i64: 1, 2, 128, 128>}]} {
    %c0 = arith.constant 0 : index
    %c0_0 = arith.constant 0 : index
    %c0_1 = arith.constant 0 : index
    %0 = vector.load %arg2[%c0, %c0_0, %c0_1] : memref<1x128x256xf32, #tpu.memory_space<vmem>>, vector<1x128x256xf32>
    %1 = vector.shape_cast %0 : vector<1x128x256xf32> to vector<128x256xf32>
    %c0_2 = arith.constant 0 : index
    %c0_3 = arith.constant 0 : index
    %2 = vector.load %arg3[%c0_2, %c0_3] : memref<1x256xf32, #tpu.memory_space<vmem>>, vector<1x256xf32>
    %c0_4 = arith.constant 0 : index
    %c0_5 = arith.constant 0 : index
    %3 = vector.load %arg4[%c0_4, %c0_5] : memref<1x256xf32, #tpu.memory_space<vmem>>, vector<1x256xf32>
    %cst = arith.constant dense<0.000000e+00> : vector<128xf32>
    %4 = vector.multi_reduction <add>, %1, %cst [1] : vector<128x256xf32> to vector<128xf32>
    %5 = vector.shape_cast %4 : vector<128xf32> to vector<128x1xf32>
    %cst_6 = arith.constant 2.560000e+02 : f32
    %6 = vector.broadcast %cst_6 : f32 to vector<128x1xf32>
    %7 = arith.divf %5, %6 : vector<128x1xf32>
    %8 = vector.broadcast %7 : vector<128x1xf32> to vector<128x256xf32>
    %9 = arith.subf %1, %8 : vector<128x256xf32>
    %10 = arith.mulf %9, %9 : vector<128x256xf32>
    %cst_7 = arith.constant dense<0.000000e+00> : vector<128xf32>
    %11 = vector.multi_reduction <add>, %10, %cst_7 [1] : vector<128x256xf32> to vector<128xf32>
    %12 = vector.shape_cast %11 : vector<128xf32> to vector<128x1xf32>
    %cst_8 = arith.constant 2.560000e+02 : f32
    %13 = vector.broadcast %cst_8 : f32 to vector<128x1xf32>
    %14 = arith.divf %12, %13 : vector<128x1xf32>
    %15 = vector.broadcast %7 : vector<128x1xf32> to vector<128x256xf32>
    %16 = arith.subf %1, %15 : vector<128x256xf32>
    %cst_9 = arith.constant 9.99999974E-6 : f32
    %17 = vector.broadcast %cst_9 : f32 to vector<128x1xf32>
    %18 = arith.addf %14, %17 : vector<128x1xf32>
    %19 = math.rsqrt %18 : vector<128x1xf32>
    %20 = vector.broadcast %19 : vector<128x1xf32> to vector<128x256xf32>
    %21 = arith.mulf %16, %20 : vector<128x256xf32>
    %22 = vector.broadcast %2 : vector<1x256xf32> to vector<128x256xf32>
    %23 = arith.mulf %21, %22 : vector<128x256xf32>
    %24 = vector.broadcast %3 : vector<1x256xf32> to vector<128x256xf32>
    %25 = arith.addf %23, %24 : vector<128x256xf32>
    %26 = arith.truncf %25 : vector<128x256xf32> to vector<128x256xbf16>
    %c0_10 = arith.constant 0 : index
    %c0_11 = arith.constant 0 : index
    %27 = vector.load %arg5[%c0_10, %c0_11] : memref<256x768xbf16, #tpu.memory_space<vmem>>, vector<256x768xbf16>
    %cst_12 = arith.constant dense<0.000000e+00> : vector<128x768xf32>
    %28 = tpu.matmul %26, %27, %cst_12 {dimension_numbers = #tpu.dot_dimension_numbers<[1], [0], [0], [1], [0, 0, 1, 1], [], []>} : vector<128x256xbf16>, vector<256x768xbf16>, vector<128x768xf32> -> vector<128x768xf32>
    %c0_13 = arith.constant 0 : index
    %c0_14 = arith.constant 0 : index
    %29 = vector.load %arg6[%c0_13, %c0_14] : memref<1x768xf32, #tpu.memory_space<vmem>>, vector<1x768xf32>
    %30 = vector.broadcast %29 : vector<1x768xf32> to vector<128x768xf32>
    %31 = arith.addf %28, %30 : vector<128x768xf32>
    %32 = arith.truncf %31 : vector<128x768xf32> to vector<128x768xbf16>
    %33 = vector.extract_strided_slice %32 {offsets = [0, 0], sizes = [128, 128], strides = [1, 1]} : vector<128x768xbf16> to vector<128x128xbf16>
    %c0_15 = arith.constant 0 : index
    %c0_16 = arith.constant 0 : index
    %c0_17 = arith.constant 0 : index
    %c0_18 = arith.constant 0 : index
    %34 = vector.load %arg7[%c0_15, %c0_16, %c0_17, %c0_18] : memref<1x2x128x128xbf16, #tpu.memory_space<vmem>>, vector<1x1x128x128xbf16>
    %35 = vector.shape_cast %34 : vector<1x1x128x128xbf16> to vector<128x128xbf16>
    %36 = vector.shape_cast %33 : vector<128x128xbf16> to vector<1x1x128x128xbf16>
    tpu.vector_store %arg7[%c0_15, %c0_16, %c0_17, %c0_18], %36 {strides = array<i32>} : memref<1x2x128x128xbf16, #tpu.memory_space<vmem>>, vector<1x1x128x128xbf16>,
    %37 = vector.extract_strided_slice %32 {offsets = [0, 128], sizes = [128, 128], strides = [1, 1]} : vector<128x768xbf16> to vector<128x128xbf16>
    %c0_19 = arith.constant 0 : index
    %c1 = arith.constant 1 : index
    %c0_20 = arith.constant 0 : index
    %c0_21 = arith.constant 0 : index
    %38 = vector.load %arg7[%c0_19, %c1, %c0_20, %c0_21] : memref<1x2x128x128xbf16, #tpu.memory_space<vmem>>, vector<1x1x128x128xbf16>
    %39 = vector.shape_cast %38 : vector<1x1x128x128xbf16> to vector<128x128xbf16>
    %40 = vector.shape_cast %37 : vector<128x128xbf16> to vector<1x1x128x128xbf16>
    tpu.vector_store %arg7[%c0_19, %c1, %c0_20, %c0_21], %40 {strides = array<i32>} : memref<1x2x128x128xbf16, #tpu.memory_space<vmem>>, vector<1x1x128x128xbf16>,
    %41 = vector.extract_strided_slice %32 {offsets = [0, 256], sizes = [128, 128], strides = [1, 1]} : vector<128x768xbf16> to vector<128x128xbf16>
    %c0_22 = arith.constant 0 : index
    %c0_23 = arith.constant 0 : index
    %c0_24 = arith.constant 0 : index
    %c0_25 = arith.constant 0 : index
    %42 = vector.load %arg8[%c0_22, %c0_23, %c0_24, %c0_25] : memref<1x2x128x128xbf16, #tpu.memory_space<vmem>>, vector<1x1x128x128xbf16>
    %43 = vector.shape_cast %42 : vector<1x1x128x128xbf16> to vector<128x128xbf16>
    %44 = vector.shape_cast %41 : vector<128x128xbf16> to vector<1x1x128x128xbf16>
    tpu.vector_store %arg8[%c0_22, %c0_23, %c0_24, %c0_25], %44 {strides = array<i32>} : memref<1x2x128x128xbf16, #tpu.memory_space<vmem>>, vector<1x1x128x128xbf16>,
    %45 = vector.extract_strided_slice %32 {offsets = [0, 384], sizes = [128, 128], strides = [1, 1]} : vector<128x768xbf16> to vector<128x128xbf16>
    %c0_26 = arith.constant 0 : index
    %c1_27 = arith.constant 1 : index
    %c0_28 = arith.constant 0 : index
    %c0_29 = arith.constant 0 : index
    %46 = vector.load %arg8[%c0_26, %c1_27, %c0_28, %c0_29] : memref<1x2x128x128xbf16, #tpu.memory_space<vmem>>, vector<1x1x128x128xbf16>
    %47 = vector.shape_cast %46 : vector<1x1x128x128xbf16> to vector<128x128xbf16>
    %48 = vector.shape_cast %45 : vector<128x128xbf16> to vector<1x1x128x128xbf16>
    tpu.vector_store %arg8[%c0_26, %c1_27, %c0_28, %c0_29], %48 {strides = array<i32>} : memref<1x2x128x128xbf16, #tpu.memory_space<vmem>>, vector<1x1x128x128xbf16>,
    %49 = vector.extract_strided_slice %32 {offsets = [0, 512], sizes = [128, 128], strides = [1, 1]} : vector<128x768xbf16> to vector<128x128xbf16>
    %c0_30 = arith.constant 0 : index
    %c0_31 = arith.constant 0 : index
    %c0_32 = arith.constant 0 : index
    %c0_33 = arith.constant 0 : index
    %50 = vector.load %arg9[%c0_30, %c0_31, %c0_32, %c0_33] : memref<1x2x128x128xbf16, #tpu.memory_space<vmem>>, vector<1x1x128x128xbf16>
    %51 = vector.shape_cast %50 : vector<1x1x128x128xbf16> to vector<128x128xbf16>
    %52 = vector.shape_cast %49 : vector<128x128xbf16> to vector<1x1x128x128xbf16>
    tpu.vector_store %arg9[%c0_30, %c0_31, %c0_32, %c0_33], %52 {strides = array<i32>} : memref<1x2x128x128xbf16, #tpu.memory_space<vmem>>, vector<1x1x128x128xbf16>,
    %53 = vector.extract_strided_slice %32 {offsets = [0, 640], sizes = [128, 128], strides = [1, 1]} : vector<128x768xbf16> to vector<128x128xbf16>
    %c0_34 = arith.constant 0 : index
    %c1_35 = arith.constant 1 : index
    %c0_36 = arith.constant 0 : index
    %c0_37 = arith.constant 0 : index
    %54 = vector.load %arg9[%c0_34, %c1_35, %c0_36, %c0_37] : memref<1x2x128x128xbf16, #tpu.memory_space<vmem>>, vector<1x1x128x128xbf16>
    %55 = vector.shape_cast %54 : vector<1x1x128x128xbf16> to vector<128x128xbf16>
    %56 = vector.shape_cast %53 : vector<128x128xbf16> to vector<1x1x128x128xbf16>
    tpu.vector_store %arg9[%c0_34, %c1_35, %c0_36, %c0_37], %56 {strides = array<i32>} : memref<1x2x128x128xbf16, #tpu.memory_space<vmem>>, vector<1x1x128x128xbf16>,
    return
  }
  func.func @transform_0(%arg0: i32, %arg1: i32) -> (i32, i32, i32) {
    %c0_i32 = arith.constant 0 : i32
    %c0_i32_0 = arith.constant 0 : i32
    return %arg0, %arg1, %c0_i32 : i32, i32, i32
  }
  func.func @transform_1(%arg0: i32, %arg1: i32) -> (i32, i32) {
    %c0_i32 = arith.constant 0 : i32
    %c0_i32_0 = arith.constant 0 : i32
    %c0_i32_1 = arith.constant 0 : i32
    return %c0_i32, %c0_i32_0 : i32, i32
  }
  func.func @transform_2(%arg0: i32, %arg1: i32) -> (i32, i32) {
    %c0_i32 = arith.constant 0 : i32
    %c0_i32_0 = arith.constant 0 : i32
    %c0_i32_1 = arith.constant 0 : i32
    return %c0_i32, %c0_i32_0 : i32, i32
  }
  func.func @transform_3(%arg0: i32, %arg1: i32) -> (i32, i32) {
    %c0_i32 = arith.constant 0 : i32
    %c0_i32_0 = arith.constant 0 : i32
    %c0_i32_1 = arith.constant 0 : i32
    return %c0_i32, %c0_i32_0 : i32, i32
  }
  func.func @transform_4(%arg0: i32, %arg1: i32) -> (i32, i32) {
    %c0_i32 = arith.constant 0 : i32
    %c0_i32_0 = arith.constant 0 : i32
    %c0_i32_1 = arith.constant 0 : i32
    return %c0_i32, %c0_i32_0 : i32, i32
  }
  func.func @transform_5(%arg0: i32, %arg1: i32) -> (i32, i32, i32, i32) {
    %c0_i32 = arith.constant 0 : i32
    %c0_i32_0 = arith.constant 0 : i32
    %c0_i32_1 = arith.constant 0 : i32
    return %arg0, %c0_i32, %arg1, %c0_i32_0 : i32, i32, i32, i32
  }
  func.func @transform_6(%arg0: i32, %arg1: i32) -> (i32, i32, i32, i32) {
    %c0_i32 = arith.constant 0 : i32
    %c0_i32_0 = arith.constant 0 : i32
    %c0_i32_1 = arith.constant 0 : i32
    return %arg0, %c0_i32, %arg1, %c0_i32_0 : i32, i32, i32, i32
  }
  func.func @transform_7(%arg0: i32, %arg1: i32) -> (i32, i32, i32, i32) {
    %c0_i32 = arith.constant 0 : i32
    %c0_i32_0 = arith.constant 0 : i32
    %c0_i32_1 = arith.constant 0 : i32
    return %arg0, %c0_i32, %arg1, %c0_i32_0 : i32, i32, i32, i32
  }
}

</mosaic_0001>

<llo_original>
// kernel: tpu_custom_call.1
$region0: #{tpu_custom_call.1}
  #allocation0 [shape = 'u32[]', space=smem, size = 0x4, offset = 0x4, fixed_abs, tag = 'smem constant byte address 0x4 - core index']
  #allocation1 [shape = 'u32[144,128]{1,0:T(1,128)}', space=vmem, size = 0x12000, scoped, tag = 'internal scratch']
  #allocation11 [shape = 's32[]', space=sflag, size = 0x4, offset = 0, fixed_abs, tag = 'sflag constant byte address 0x0 - dummy sync flag']
  #allocation13 [shape = 's32[]', space=sflag, size = 0x4, offset = 0, fixed_abs, tag = 'sflag constant byte address 0x0 - dummy sync flag']
  #allocation15 [shape = 's32[]', space=sflag, size = 0x4, offset = 0, fixed_abs, tag = 'sflag constant byte address 0x0 - dummy sync flag']
  %s0 = inlined_call_operand.hbm [shape: f32[2,256,256], index: 0, kind: input, shape index: {}]
  %s1 = inlined_call_operand.vmem [shape: f32[1,256], index: 1, kind: input, shape index: {}]
  %s2 = inlined_call_operand.vmem [shape: f32[1,256], index: 2, kind: input, shape index: {}]
  %s3 = inlined_call_operand.hbm [shape: bf16[256,768], index: 3, kind: input, shape index: {}]
  %s4 = inlined_call_operand.vmem [shape: f32[1,768], index: 4, kind: input, shape index: {}]
  %s5 = inlined_call_operand.hbm [shape: bf16[2,2,256,128], index: 5, kind: output, shape index: {0}]
  %s6 = inlined_call_operand.hbm [shape: bf16[2,2,256,128], index: 6, kind: output, shape index: {1}]
  %s7 = inlined_call_operand.hbm [shape: bf16[2,2,256,128], index: 7, kind: output, shape index: {2}]
  %8 = xla_tuple %s5, %s6, %s7
  %s9 = sld [smem:[#allocation0]]
  $region77: #{tpu_custom_call.1} parent=0
    _
  %s11 = ssub.s32 1, %s9
  %s12 = scalar_select 0, %s11, %s9
  $region1: #{tpu_custom_call.1} parent=0
    #allocation2 [shape = 'u8[262144]{0}', space=vmem, size = 0x40000, scoped, tag = 'input window, operand 0']
    #allocation3 [shape = 's32[2]{0}', space=sflag, size = 0x8, scoped, tag = 'scoped memory for tpu_custom_call.1']
    #allocation4 [shape = 's32[2]{0}', space=sflag, size = 0x8, scoped, tag = 'scoped memory for tpu_custom_call.1']
    #allocation5 [shape = 'u8[393216]{0}', space=vmem, size = 0x60000, scoped, tag = 'input window, operand 3, single buffered']
    #allocation6 [shape = 's32[1]{0}', space=sflag, size = 0x4, scoped, tag = 'scoped memory for tpu_custom_call.1']
    #allocation7 [shape = 'u8[131072]{0}', space=vmem, size = 0x20000, scoped, tag = 'output window, operand 0']
    #allocation8 [shape = 'u8[131072]{0}', space=vmem, size = 0x20000, scoped, tag = 'output window, operand 1']
    #allocation9 [shape = 's32[2]{0}', space=sflag, size = 0x8, scoped, tag = 'scoped memory for tpu_custom_call.1']
    #allocation10 [shape = 'u8[131072]{0}', space=vmem, size = 0x20000, scoped, tag = 'output window, operand 2']
    %13 = vsyncpa [#allocation3], 0
    %s14 = scalar_lea.sflag [#allocation3], 1
    %15 = vsyncpa %s14, 0
    %16 = vsyncpa [#allocation6], 0
    %17 = vsyncpa [#allocation4], 0
    %s18 = scalar_lea.sflag [#allocation4], 1
    %19 = vsyncpa %s18, 0
    %20 = vsyncpa [#allocation9], 0
    %s21 = scalar_lea.sflag [#allocation9], 1
    %22 = vsyncpa %s21, 0
    loop: start=0, step=1, limit=6
    $region2: #{tpu_custom_call.1} parent=1 // loop_pre_header
      _
    $region3: #{tpu_custom_call.1} parent=1 // loop_header
      %s24 = sphi 0, %s28
      %p25 = scmp.ge.s32.totalorder %s24, 6
      %s31 = sphi 0, %s43
      %s32 = sphi 0, %s39
      %s33 = sphi 0, %s31
      %s34 = sphi 0, %s32
      %s35 = sphi 0, %s33
      %s36 = sphi 0, %s34
      %s48 = sphi 0, %s50
      %s51 = sphi 0, %s48
      %s52 = sphi 0, %s51
      %s68 = sphi 0, %s52
      %s72 = sphi 0, %s72
      %s74 = sphi 0, %s72
      %s75 = sphi 0, %s74
      %s89 = sphi 0, %s75
      %s93 = sphi 0, %s93
      %s95 = sphi 0, %s93
      %s96 = sphi 0, %s95
      %s110 = sphi 0, %s96
      %s114 = sphi 0, %s114
      %s116 = sphi 0, %s114
      %s117 = sphi 0, %s116
      %s131 = sphi 0, %s117
      %s135 = sphi 0, %s135
      %s137 = sphi 0, %s135
      %s138 = sphi 0, %s137
      %s152 = sphi 0, %s138
      %s160 = sphi 0, %s162
      %s163 = sphi 0, %s160
      %s164 = sphi 0, %s163
      %s180 = sphi 0, %s164
      %s188 = sphi 0, %s190
      %s191 = sphi 0, %s188
      %s192 = sphi 0, %s191
      %s208 = sphi 0, %s192
      %s216 = sphi 0, %s218
      %s219 = sphi 0, %s216
      %s220 = sphi 0, %s219
      %s236 = sphi 0, %s220
    $region4: #{tpu_custom_call.1} parent=1 // loop_header_branch
      %27 = sbr.rel (%p25) target = $region8
    $region5: #{tpu_custom_call.1} parent=1 // loop_body
      %s29 = ssub.s32 %s24, 1
      %s30 = ssub.s32 %s24, 2
      %s37 = sadd.s32 1, %s32
      %p38 = scmp.ge.s32.totalorder %s37, 2
      %s39 = scalar_select %p38, 0, %s37
      %s40 = sadd.s32 1, %s31
      %s41 = scalar_select %p38, %s40, %s31
      %p42 = scmp.ge.s32.totalorder %s41, 2
      %s43 = scalar_select %p42, 0, %s41
      %s44 = ssub.s32 %s31, %s43
      %s45 = ssub.s32 %s32, %s39
      %s46 = sor.u32 %s44, %s45
      %p47 = scmp.eq.s32.totalorder %s46, 0
      %s49 = sadd.s32 %s48, 1
      %s50 = scalar_select %p47, %s48, %s49
      %p53 = pneg %p47
      %p54 = scmp.eq.s32.totalorder %s24, 3
      %p55 = por %p53, %p54
      %p56 = scmp.ne.s32.totalorder %s48, %s51
      %p57 = scmp.eq.s32.totalorder %s24, 0
      %p58 = por %p56, %p57
      %p59 = scmp.ne.s32.totalorder %s48, %s51
      %p60 = scmp.eq.s32.totalorder %s29, 3
      %p61 = por %p59, %p60
      %p62 = scmp.ne.s32.totalorder %s51, %s52
      %p63 = scmp.eq.s32.totalorder %s29, 0
      %p64 = por %p62, %p63
      %p65 = scmp.ne.s32.totalorder %s51, %s52
      %p66 = scmp.eq.s32.totalorder %s30, 3
      %p67 = por %p65, %p66
      %p69 = scmp.ne.s32.totalorder %s52, %s68
      %p70 = scmp.eq.s32.totalorder %s30, 0
      %p71 = por %p69, %p70
      %s73 = sadd.s32 %s72, 1
      %p76 = scmp.eq.s32.totalorder %s24, 3
      %p77 = scmp.ne.s32.totalorder %s72, %s74
      %p78 = scmp.eq.s32.totalorder %s24, 0
      %p79 = por %p77, %p78
      %p80 = scmp.ne.s32.totalorder %s72, %s74
      %p81 = scmp.eq.s32.totalorder %s29, 3
      %p82 = por %p80, %p81
      %p83 = scmp.ne.s32.totalorder %s74, %s75
      %p84 = scmp.eq.s32.totalorder %s29, 0
      %p85 = por %p83, %p84
      %p86 = scmp.ne.s32.totalorder %s74, %s75
      %p87 = scmp.eq.s32.totalorder %s30, 3
      %p88 = por %p86, %p87
      %p90 = scmp.ne.s32.totalorder %s75, %s89
      %p91 = scmp.eq.s32.totalorder %s30, 0
      %p92 = por %p90, %p91
      %s94 = sadd.s32 %s93, 1
      %p97 = scmp.eq.s32.totalorder %s24, 3
      %p98 = scmp.ne.s32.totalorder %s93, %s95
      %p99 = scmp.eq.s32.totalorder %s24, 0
      %p100 = por %p98, %p99
      %p101 = scmp.ne.s32.totalorder %s93, %s95
      %p102 = scmp.eq.s32.totalorder %s29, 3
      %p103 = por %p101, %p102
      %p104 = scmp.ne.s32.totalorder %s95, %s96
      %p105 = scmp.eq.s32.totalorder %s29, 0
      %p106 = por %p104, %p105
      %p107 = scmp.ne.s32.totalorder %s95, %s96
      %p108 = scmp.eq.s32.totalorder %s30, 3
      %p109 = por %p107, %p108
      %p111 = scmp.ne.s32.totalorder %s96, %s110
      %p112 = scmp.eq.s32.totalorder %s30, 0
      %p113 = por %p111, %p112
      %s115 = sadd.s32 %s114, 1
      %p118 = scmp.eq.s32.totalorder %s24, 3
      %p119 = scmp.ne.s32.totalorder %s114, %s116
      %p120 = scmp.eq.s32.totalorder %s24, 0
      %p121 = por %p119, %p120
      %p122 = scmp.ne.s32.totalorder %s114, %s116
      %p123 = scmp.eq.s32.totalorder %s29, 3
      %p124 = por %p122, %p123
      %p125 = scmp.ne.s32.totalorder %s116, %s117
      %p126 = scmp.eq.s32.totalorder %s29, 0
      %p127 = por %p125, %p126
      %p128 = scmp.ne.s32.totalorder %s116, %s117
      %p129 = scmp.eq.s32.totalorder %s30, 3
      %p130 = por %p128, %p129
      %p132 = scmp.ne.s32.totalorder %s117, %s131
      %p133 = scmp.eq.s32.totalorder %s30, 0
      %p134 = por %p132, %p133
      %s136 = sadd.s32 %s135, 1
      %p139 = scmp.eq.s32.totalorder %s24, 3
      %p140 = scmp.ne.s32.totalorder %s135, %s137
      %p141 = scmp.eq.s32.totalorder %s24, 0
      %p142 = por %p140, %p141
      %p143 = scmp.ne.s32.totalorder %s135, %s137
      %p144 = scmp.eq.s32.totalorder %s29, 3
      %p145 = por %p143, %p144
      %p146 = scmp.ne.s32.totalorder %s137, %s138
      %p147 = scmp.eq.s32.totalorder %s29, 0
      %p148 = por %p146, %p147
      %p149 = scmp.ne.s32.totalorder %s137, %s138
      %p150 = scmp.eq.s32.totalorder %s30, 3
      %p151 = por %p149, %p150
      %p153 = scmp.ne.s32.totalorder %s138, %s152
      %p154 = scmp.eq.s32.totalorder %s30, 0
      %p155 = por %p153, %p154
      %s156 = ssub.s32 %s31, %s43
      %s157 = ssub.s32 %s32, %s39
      %s158 = sor.u32 %s156, %s157
      %p159 = scmp.eq.s32.totalorder %s158, 0
      %s161 = sadd.s32 %s160, 1
      %s162 = scalar_select %p159, %s160, %s161
      %p165 = pneg %p159
      %p166 = scmp.eq.s32.totalorder %s24, 3
      %p167 = por %p165, %p166
      %p168 = scmp.ne.s32.totalorder %s160, %s163
      %p169 = scmp.eq.s32.totalorder %s24, 0
      %p170 = por %p168, %p169
      %p171 = scmp.ne.s32.totalorder %s160, %s163
      %p172 = scmp.eq.s32.totalorder %s29, 3
      %p173 = por %p171, %p172
      %p174 = scmp.ne.s32.totalorder %s163, %s164
      %p175 = scmp.eq.s32.totalorder %s29, 0
      %p176 = por %p174, %p175
      %p177 = scmp.ne.s32.totalorder %s163, %s164
      %p178 = scmp.eq.s32.totalorder %s30, 3
      %p179 = por %p177, %p178
      %p181 = scmp.ne.s32.totalorder %s164, %s180
      %p182 = scmp.eq.s32.totalorder %s30, 0
      %p183 = por %p181, %p182
      %s184 = ssub.s32 %s31, %s43
      %s185 = ssub.s32 %s32, %s39
      %s186 = sor.u32 %s184, %s185
      %p187 = scmp.eq.s32.totalorder %s186, 0
      %s189 = sadd.s32 %s188, 1
      %s190 = scalar_select %p187, %s188, %s189
      %p193 = pneg %p187
      %p194 = scmp.eq.s32.totalorder %s24, 3
      %p195 = por %p193, %p194
      %p196 = scmp.ne.s32.totalorder %s188, %s191
      %p197 = scmp.eq.s32.totalorder %s24, 0
      %p198 = por %p196, %p197
      %p199 = scmp.ne.s32.totalorder %s188, %s191
      %p200 = scmp.eq.s32.totalorder %s29, 3
      %p201 = por %p199, %p200
      %p202 = scmp.ne.s32.totalorder %s191, %s192
      %p203 = scmp.eq.s32.totalorder %s29, 0
      %p204 = por %p202, %p203
      %p205 = scmp.ne.s32.totalorder %s191, %s192
      %p206 = scmp.eq.s32.totalorder %s30, 3
      %p207 = por %p205, %p206
      %p209 = scmp.ne.s32.totalorder %s192, %s208
      %p210 = scmp.eq.s32.totalorder %s30, 0
      %p211 = por %p209, %p210
      %s212 = ssub.s32 %s31, %s43
      %s213 = ssub.s32 %s32, %s39
      %s214 = sor.u32 %s212, %s213
      %p215 = scmp.eq.s32.totalorder %s214, 0
      %s217 = sadd.s32 %s216, 1
      %s218 = scalar_select %p215, %s216, %s217
      %p221 = pneg %p215
      %p222 = scmp.eq.s32.totalorder %s24, 3
      %p223 = por %p221, %p222
      %p224 = scmp.ne.s32.totalorder %s216, %s219
      %p225 = scmp.eq.s32.totalorder %s24, 0
      %p226 = por %p224, %p225
      %p227 = scmp.ne.s32.totalorder %s216, %s219
      %p228 = scmp.eq.s32.totalorder %s29, 3
      %p229 = por %p227, %p228
      %p230 = scmp.ne.s32.totalorder %s219, %s220
      %p231 = scmp.eq.s32.totalorder %s29, 0
      %p232 = por %p230, %p231
      %p233 = scmp.ne.s32.totalorder %s219, %s220
      %p234 = scmp.eq.s32.totalorder %s30, 3
      %p235 = por %p233, %p234
      %p237 = scmp.ne.s32.totalorder %s220, %s236
      %p238 = scmp.eq.s32.totalorder %s30, 0
      %p239 = por %p237, %p238
      %p240 = scmp.le.s32.totalorder 1, %s24
      %p241 = scmp.lt.s32.totalorder %s24, 5
      %p242 = pnand %p240, %p241
      %p243 = pneg %p242
      // Predicated region
      $region9: #{tpu_custom_call.1} parent=5 // pred_check
        _
      $region10: #{tpu_custom_call.1} parent=5 // pred_check_branch
        %245 = sbr.rel (%p242) target = $region12
      $region11: #{tpu_custom_call.1} parent=5 // pred_region
        %s246 = ssub.s32 %s24, 1
        // Predicated region
        $region13: #{tpu_custom_call.1} parent=11 // pred_check
          %p247 = pneg %p85
        $region14: #{tpu_custom_call.1} parent=11 // pred_check_branch
          %249 = sbr.rel (%p247) target = $region16
        $region15: #{tpu_custom_call.1} parent=11 // pred_region
          _
        $region16: #{tpu_custom_call.1} parent=11 // pred_fallthru
          _
        // Predicated region
        $region17: #{tpu_custom_call.1} parent=11 // pred_check
          %p250 = pneg %p106
        $region18: #{tpu_custom_call.1} parent=11 // pred_check_branch
          %252 = sbr.rel (%p250) target = $region20
        $region19: #{tpu_custom_call.1} parent=11 // pred_region
          _
        $region20: #{tpu_custom_call.1} parent=11 // pred_fallthru
          _
        // Predicated region
        $region21: #{tpu_custom_call.1} parent=11 // pred_check
          %p253 = pneg %p127
        $region22: #{tpu_custom_call.1} parent=11 // pred_check_branch
          %255 = sbr.rel (%p253) target = $region24
        $region23: #{tpu_custom_call.1} parent=11 // pred_region
          %s257 = ssub.s32 12288, 12288
          %258 = vsyncadd [#allocation6], %s257
          %s259 = sshll.u32 [#allocation5], 4
          %s260 = int_to_ptr.vmem [resolvable:$true] %s259
          %265 = dma.hbm_to_vmem [thread:$0]  %s3, 12288, %s260, [#allocation6], 384, 384, 24
        $region24: #{tpu_custom_call.1} parent=11 // pred_fallthru
          _
        // Predicated region
        $region25: #{tpu_custom_call.1} parent=11 // pred_check
          %p266 = pneg %p148
        $region26: #{tpu_custom_call.1} parent=11 // pred_check_branch
          %268 = sbr.rel (%p266) target = $region28
        $region27: #{tpu_custom_call.1} parent=11 // pred_region
          _
        $region28: #{tpu_custom_call.1} parent=11 // pred_fallthru
          _
      $region12: #{tpu_custom_call.1} parent=5 // pred_fallthru
        _
      %p269 = scmp.lt.s32.totalorder %s24, 4
      // Predicated region
      $region29: #{tpu_custom_call.1} parent=5 // pred_check
        %p270 = pneg %p269
      $region30: #{tpu_custom_call.1} parent=5 // pred_check_branch
        %272 = sbr.rel (%p270) target = $region32
      $region31: #{tpu_custom_call.1} parent=5 // pred_region
        // Predicated region
        $region33: #{tpu_custom_call.1} parent=31 // pred_check
          %p273 = pneg %p58
        $region34: #{tpu_custom_call.1} parent=31 // pred_check_branch
          %275 = sbr.rel (%p273) target = $region36
        $region35: #{tpu_custom_call.1} parent=31 // pred_region
          %s276 = sand.u32 %s48, 1
          %s277 = scalar_lea.sflag [#allocation3], %s276
          %s278 = sand.u32 %s48, 1
          %s279 = smul.addr %s278, 256
          %s280 = scalar_lea.vmem [#allocation2], %s279
          %s281 = smul.u32 16, %s32
          %s283 = ssub.s32 4096, 4096
          %284 = vsyncadd %s277, %s283
          %s285 = smul.addr %s281, 2
          %s286 = smul.addr %s31, 64
          %s287 = sadd.s32 %s285, %s286
          %s288 = smul.addr %s287, 128
          %s289 = scalar_lea.hbm %s0, %s288
          %s290 = sshll.u32 %s280, 4
          %s291 = int_to_ptr.vmem [resolvable:$true] %s290
          %296 = dma.hbm_to_vmem [thread:$0]  %s289, 4096, %s291, %s277, 256, 256, 16
        $region36: #{tpu_custom_call.1} parent=31 // pred_fallthru
          _
      $region32: #{tpu_custom_call.1} parent=5 // pred_fallthru
        _
      %p297 = scmp.le.s32.totalorder 1, %s24
      %p298 = scmp.lt.s32.totalorder %s24, 5
      %p299 = pnand %p297, %p298
      %p300 = pneg %p299
      // Predicated region
      $region37: #{tpu_custom_call.1} parent=5 // pred_check
        _
      $region38: #{tpu_custom_call.1} parent=5 // pred_check_branch
        %302 = sbr.rel (%p299) target = $region40
      $region39: #{tpu_custom_call.1} parent=5 // pred_region
        %s303 = ssub.s32 %s24, 1
        %s304 = sand.u32 %s51, 1
        %s305 = scalar_lea.sflag [#allocation3], %s304
        %s306 = sand.u32 %s51, 1
        %s307 = smul.addr %s306, 256
        %s308 = scalar_lea.vmem [#allocation2], %s307
        // Predicated region
        $region41: #{tpu_custom_call.1} parent=39 // pred_check
          %p309 = pneg %p64
        $region42: #{tpu_custom_call.1} parent=39 // pred_check_branch
          %311 = sbr.rel (%p309) target = $region44
        $region43: #{tpu_custom_call.1} parent=39 // pred_region
          %312 = dma.done %s305, 4096
        $region44: #{tpu_custom_call.1} parent=39 // pred_fallthru
          _
        // Predicated region
        $region45: #{tpu_custom_call.1} parent=39 // pred_check
          %p313 = pneg %p127
        $region46: #{tpu_custom_call.1} parent=39 // pred_check_branch
          %315 = sbr.rel (%p313) target = $region48
        $region47: #{tpu_custom_call.1} parent=39 // pred_region
          %316 = dma.done [#allocation6], 12288
        $region48: #{tpu_custom_call.1} parent=39 // pred_fallthru
          _
        %s317 = sand.u32 %s51, 1
        %s318 = scalar_lea.sflag [#allocation3], %s317
        %s319 = sand.u32 %s51, 1
        %s320 = smul.addr %s319, 256
        %s321 = scalar_lea.vmem [#allocation2], %s320
        %p322 = pneg %p64
        %p323 = pneg %p61
        %p324 = pneg %p85
        %p325 = pneg %p82
        %p326 = pneg %p106
        %p327 = pneg %p103
        %p328 = pneg %p127
        %p329 = pneg %p124
        %p330 = pneg %p148
        %p331 = pneg %p145
        %p332 = pneg %p176
        %p333 = pneg %p173
        %s334 = sand.u32 %s163, 1
        %s335 = scalar_lea.sflag [#allocation4], %s334
        %s336 = sand.u32 %s163, 1
        %s337 = smul.addr %s336, 128
        %s338 = scalar_lea.vmem [#allocation7], %s337
        %p339 = pneg %p204
        %p340 = pneg %p201
        %s341 = sand.u32 %s29, 1
        %s342 = scalar_lea.sflag [#allocation9], %s341
        %s343 = sand.u32 %s191, 1
        %s344 = smul.addr %s343, 128
        %s345 = scalar_lea.vmem [#allocation8], %s344
        %p346 = pneg %p232
        %p347 = pneg %p229
        %s348 = sand.u32 %s29, 1
        %s349 = scalar_lea.sflag [#allocation9], %s348
        %s350 = sand.u32 %s219, 1
        %s351 = smul.addr %s350, 128
        %s352 = scalar_lea.vmem [#allocation10], %s351
        %s353 = smul.u32 16, %s34
        %s354 = smul.u32 16, %s34
        %s355 = smul.u32 16, %s34
        %s356 = smul.u32 16, %s34
        %v357 = vld [vmem:[%s308] sm:$0xff]
        %v358 = vld [vmem:[%s308 + $0x8] sm:$0xff]
        %v359 = vld [vmem:[%s308 + $0x10] sm:$0xff]
        %v360 = vld [vmem:[%s308 + $0x18] sm:$0xff]
        %v361 = vld [vmem:[%s308 + $0x20] sm:$0xff]
        %v362 = vld [vmem:[%s308 + $0x28] sm:$0xff]
        %v363 = vld [vmem:[%s308 + $0x30] sm:$0xff]
        %v364 = vld [vmem:[%s308 + $0x38] sm:$0xff]
        %v365 = vld [vmem:[%s308 + $0x40] sm:$0xff]
        %v366 = vld [vmem:[%s308 + $0x48] sm:$0xff]
        %v367 = vld [vmem:[%s308 + $0x50] sm:$0xff]
        %v368 = vld [vmem:[%s308 + $0x58] sm:$0xff]
        %v369 = vld [vmem:[%s308 + $0x60] sm:$0xff]
        %v370 = vld [vmem:[%s308 + $0x68] sm:$0xff]
        %v371 = vld [vmem:[%s308 + $0x70] sm:$0xff]
        %v372 = vld [vmem:[%s308 + $0x78] sm:$0xff]
        %v373 = vld [vmem:[%s308 + $0x80] sm:$0xff]
        %v374 = vld [vmem:[%s308 + $0x88] sm:$0xff]
        %v375 = vld [vmem:[%s308 + $0x90] sm:$0xff]
        %v376 = vld [vmem:[%s308 + $0x98] sm:$0xff]
        %v377 = vld [vmem:[%s308 + $0xa0] sm:$0xff]
        %v378 = vld [vmem:[%s308 + $0xa8] sm:$0xff]
        %v379 = vld [vmem:[%s308 + $0xb0] sm:$0xff]
        %v380 = vld [vmem:[%s308 + $0xb8] sm:$0xff]
        %v381 = vld [vmem:[%s308 + $0xc0] sm:$0xff]
        %v382 = vld [vmem:[%s308 + $0xc8] sm:$0xff]
        %v383 = vld [vmem:[%s308 + $0xd0] sm:$0xff]
        %v384 = vld [vmem:[%s308 + $0xd8] sm:$0xff]
        %v385 = vld [vmem:[%s308 + $0xe0] sm:$0xff]
        %v386 = vld [vmem:[%s308 + $0xe8] sm:$0xff]
        %v387 = vld [vmem:[%s308 + $0xf0] sm:$0xff]
        %v388 = vld [vmem:[%s308 + $0xf8] sm:$0xff]
        %v389 = vld [vmem:[%s1] sm:$0x3]
        %v390 = vld [vmem:[%s2] sm:$0x3]
        %v391 = vadd.f32 %v357, %v358
        %392 = vadd.xlane.f32.xlu0 %v391
        %v393 = vpop.xlane.xlu0 %392
        %v394 = vadd.f32 %v359, %v360
        %395 = vadd.xlane.f32.xlu0 %v394
        %v396 = vpop.xlane.xlu0 %395
        %v397 = vadd.f32 %v361, %v362
        %398 = vadd.xlane.f32.xlu0 %v397
        %v399 = vpop.xlane.xlu0 %398
        %v400 = vadd.f32 %v363, %v364
        %401 = vadd.xlane.f32.xlu0 %v400
        %v402 = vpop.xlane.xlu0 %401
        %v403 = vadd.f32 %v365, %v366
        %404 = vadd.xlane.f32.xlu0 %v403
        %v405 = vpop.xlane.xlu0 %404
        %v406 = vadd.f32 %v367, %v368
        %407 = vadd.xlane.f32.xlu0 %v406
        %v408 = vpop.xlane.xlu0 %407
        %v409 = vadd.f32 %v369, %v370
        %410 = vadd.xlane.f32.xlu0 %v409
        %v411 = vpop.xlane.xlu0 %410
        %v412 = vadd.f32 %v371, %v372
        %413 = vadd.xlane.f32.xlu0 %v412
        %v414 = vpop.xlane.xlu0 %413
        %v415 = vadd.f32 %v373, %v374
        %416 = vadd.xlane.f32.xlu0 %v415
        %v417 = vpop.xlane.xlu0 %416
        %v418 = vadd.f32 %v375, %v376
        %419 = vadd.xlane.f32.xlu0 %v418
        %v420 = vpop.xlane.xlu0 %419
        %v421 = vadd.f32 %v377, %v378
        %422 = vadd.xlane.f32.xlu0 %v421
        %v423 = vpop.xlane.xlu0 %422
        %v424 = vadd.f32 %v379, %v380
        %425 = vadd.xlane.f32.xlu0 %v424
        %v426 = vpop.xlane.xlu0 %425
        %v427 = vadd.f32 %v381, %v382
        %428 = vadd.xlane.f32.xlu0 %v427
        %v429 = vpop.xlane.xlu0 %428
        %v430 = vadd.f32 %v383, %v384
        %431 = vadd.xlane.f32.xlu0 %v430
        %v432 = vpop.xlane.xlu0 %431
        %v433 = vadd.f32 %v385, %v386
        %434 = vadd.xlane.f32.xlu0 %v433
        %v435 = vpop.xlane.xlu0 %434
        %v436 = vadd.f32 %v387, %v388
        %437 = vadd.xlane.f32.xlu0 %v436
        %v438 = vpop.xlane.xlu0 %437
        %v439 = vrcp.pop 256.0
        %v440 = vmul.f32 %v393, %v439
        %v441 = vmul.f32 %v396, %v439
        %v442 = vmul.f32 %v399, %v439
        %v443 = vmul.f32 %v402, %v439
        %v444 = vmul.f32 %v405, %v439
        %v445 = vmul.f32 %v408, %v439
        %v446 = vmul.f32 %v411, %v439
        %v447 = vmul.f32 %v414, %v439
        %v448 = vmul.f32 %v417, %v439
        %v449 = vmul.f32 %v420, %v439
        %v450 = vmul.f32 %v423, %v439
        %v451 = vmul.f32 %v426, %v439
        %v452 = vmul.f32 %v429, %v439
        %v453 = vmul.f32 %v432, %v439
        %v454 = vmul.f32 %v435, %v439
        %v455 = vmul.f32 %v438, %v439
        %v456 = vsub.f32 %v357, %v440
        %v457 = vsub.f32 %v358, %v440
        %v458 = vsub.f32 %v359, %v441
        %v459 = vsub.f32 %v360, %v441
        %v460 = vsub.f32 %v361, %v442
        %v461 = vsub.f32 %v362, %v442
        %v462 = vsub.f32 %v363, %v443
        %v463 = vsub.f32 %v364, %v443
        %v464 = vsub.f32 %v365, %v444
        %v465 = vsub.f32 %v366, %v444
        %v466 = vsub.f32 %v367, %v445
        %v467 = vsub.f32 %v368, %v445
        %v468 = vsub.f32 %v369, %v446
        %v469 = vsub.f32 %v370, %v446
        %v470 = vsub.f32 %v371, %v447
        %v471 = vsub.f32 %v372, %v447
        %v472 = vsub.f32 %v373, %v448
        %v473 = vsub.f32 %v374, %v448
        %v474 = vsub.f32 %v375, %v449
        %v475 = vsub.f32 %v376, %v449
        %v476 = vsub.f32 %v377, %v450
        %v477 = vsub.f32 %v378, %v450
        %v478 = vsub.f32 %v379, %v451
        %v479 = vsub.f32 %v380, %v451
        %v480 = vsub.f32 %v381, %v452
        %v481 = vsub.f32 %v382, %v452
        %v482 = vsub.f32 %v383, %v453
        %v483 = vsub.f32 %v384, %v453
        %v484 = vsub.f32 %v385, %v454
        %v485 = vsub.f32 %v386, %v454
        %v486 = vsub.f32 %v387, %v455
        %v487 = vsub.f32 %v388, %v455
        %v488 = vmul.f32 %v456, %v456
        %v489 = vmul.f32 %v457, %v457
        %v490 = vmul.f32 %v458, %v458
        %v491 = vmul.f32 %v459, %v459
        %v492 = vmul.f32 %v460, %v460
        %v493 = vmul.f32 %v461, %v461
        %v494 = vmul.f32 %v462, %v462
        %v495 = vmul.f32 %v463, %v463
        %v496 = vmul.f32 %v464, %v464
        %v497 = vmul.f32 %v465, %v465
        %v498 = vmul.f32 %v466, %v466
        %v499 = vmul.f32 %v467, %v467
        %v500 = vmul.f32 %v468, %v468
        %v501 = vmul.f32 %v469, %v469
        %v502 = vmul.f32 %v470, %v470
        %v503 = vmul.f32 %v471, %v471
        %v504 = vmul.f32 %v472, %v472
        %v505 = vmul.f32 %v473, %v473
        %v506 = vmul.f32 %v474, %v474
        %v507 = vmul.f32 %v475, %v475
        %v508 = vmul.f32 %v476, %v476
        %v509 = vmul.f32 %v477, %v477
        %v510 = vmul.f32 %v478, %v478
        %v511 = vmul.f32 %v479, %v479
        %v512 = vmul.f32 %v480, %v480
        %v513 = vmul.f32 %v481, %v481
        %v514 = vmul.f32 %v482, %v482
        %v515 = vmul.f32 %v483, %v483
        %v516 = vmul.f32 %v484, %v484
        %v517 = vmul.f32 %v485, %v485
        %v518 = vmul.f32 %v486, %v486
        %v519 = vmul.f32 %v487, %v487
        %v520 = vadd.f32 %v488, %v489
        %521 = vadd.xlane.f32.xlu0 %v520
        %v522 = vpop.xlane.xlu0 %521
        %v523 = vadd.f32 %v490, %v491
        %524 = vadd.xlane.f32.xlu0 %v523
        %v525 = vpop.xlane.xlu0 %524
        %v526 = vadd.f32 %v492, %v493
        %527 = vadd.xlane.f32.xlu0 %v526
        %v528 = vpop.xlane.xlu0 %527
        %v529 = vadd.f32 %v494, %v495
        %530 = vadd.xlane.f32.xlu0 %v529
        %v531 = vpop.xlane.xlu0 %530
        %v532 = vadd.f32 %v496, %v497
        %533 = vadd.xlane.f32.xlu0 %v532
        %v534 = vpop.xlane.xlu0 %533
        %v535 = vadd.f32 %v498, %v499
        %536 = vadd.xlane.f32.xlu0 %v535
        %v537 = vpop.xlane.xlu0 %536
        %v538 = vadd.f32 %v500, %v501
        %539 = vadd.xlane.f32.xlu0 %v538
        %v540 = vpop.xlane.xlu0 %539
        %v541 = vadd.f32 %v502, %v503
        %542 = vadd.xlane.f32.xlu0 %v541
        %v543 = vpop.xlane.xlu0 %542
        %v544 = vadd.f32 %v504, %v505
        %545 = vadd.xlane.f32.xlu0 %v544
        %v546 = vpop.xlane.xlu0 %545
        %v547 = vadd.f32 %v506, %v507
        %548 = vadd.xlane.f32.xlu0 %v547
        %v549 = vpop.xlane.xlu0 %548
        %v550 = vadd.f32 %v508, %v509
        %551 = vadd.xlane.f32.xlu0 %v550
        %v552 = vpop.xlane.xlu0 %551
        %v553 = vadd.f32 %v510, %v511
        %554 = vadd.xlane.f32.xlu0 %v553
        %v555 = vpop.xlane.xlu0 %554
        %v556 = vadd.f32 %v512, %v513
        %557 = vadd.xlane.f32.xlu0 %v556
        %v558 = vpop.xlane.xlu0 %557
        %v559 = vadd.f32 %v514, %v515
        %560 = vadd.xlane.f32.xlu0 %v559
        %v561 = vpop.xlane.xlu0 %560
        %v562 = vadd.f32 %v516, %v517
        %563 = vadd.xlane.f32.xlu0 %v562
        %v564 = vpop.xlane.xlu0 %563
        %v565 = vadd.f32 %v518, %v519
        %566 = vadd.xlane.f32.xlu0 %v565
        %v567 = vpop.xlane.xlu0 %566
        %v568 = vmul.f32 %v522, %v439
        %v569 = vmul.f32 %v525, %v439
        %v570 = vmul.f32 %v528, %v439
        %v571 = vmul.f32 %v531, %v439
        %v572 = vmul.f32 %v534, %v439
        %v573 = vmul.f32 %v537, %v439
        %v574 = vmul.f32 %v540, %v439
        %v575 = vmul.f32 %v543, %v439
        %v576 = vmul.f32 %v546, %v439
        %v577 = vmul.f32 %v549, %v439
        %v578 = vmul.f32 %v552, %v439
        %v579 = vmul.f32 %v555, %v439
        %v580 = vmul.f32 %v558, %v439
        %v581 = vmul.f32 %v561, %v439
        %v582 = vmul.f32 %v564, %v439
        %v583 = vmul.f32 %v567, %v439
        %v584 = vadd.f32 %v568, 1e-05
        %v585 = vadd.f32 %v569, 1e-05
        %v586 = vadd.f32 %v570, 1e-05
        %v587 = vadd.f32 %v571, 1e-05
        %v588 = vadd.f32 %v572, 1e-05
        %v589 = vadd.f32 %v573, 1e-05
        %v590 = vadd.f32 %v574, 1e-05
        %v591 = vadd.f32 %v575, 1e-05
        %v592 = vadd.f32 %v576, 1e-05
        %v593 = vadd.f32 %v577, 1e-05
        %v594 = vadd.f32 %v578, 1e-05
        %v595 = vadd.f32 %v579, 1e-05
        %v596 = vadd.f32 %v580, 1e-05
        %v597 = vadd.f32 %v581, 1e-05
        %v598 = vadd.f32 %v582, 1e-05
        %v599 = vadd.f32 %v583, 1e-05
        %v600 = vrsqrt.pop %v584
        %v601 = vrsqrt.pop %v585
        %v602 = vrsqrt.pop %v586
        %v603 = vrsqrt.pop %v587
        %v604 = vrsqrt.pop %v588
        %v605 = vrsqrt.pop %v589
        %v606 = vrsqrt.pop %v590
        %v607 = vrsqrt.pop %v591
        %v608 = vrsqrt.pop %v592
        %v609 = vrsqrt.pop %v593
        %v610 = vrsqrt.pop %v594
        %v611 = vrsqrt.pop %v595
        %v612 = vrsqrt.pop %v596
        %v613 = vrsqrt.pop %v597
        %v614 = vrsqrt.pop %v598
        %v615 = vrsqrt.pop %v599
        %v616 = vmul.f32 %v456, %v600
        %v617 = vmul.f32 %v457, %v600
        %v618 = vmul.f32 %v458, %v601
        %v619 = vmul.f32 %v459, %v601
        %v620 = vmul.f32 %v460, %v602
        %v621 = vmul.f32 %v461, %v602
        %v622 = vmul.f32 %v462, %v603
        %v623 = vmul.f32 %v463, %v603
        %v624 = vmul.f32 %v464, %v604
        %v625 = vmul.f32 %v465, %v604
        %v626 = vmul.f32 %v466, %v605
        %v627 = vmul.f32 %v467, %v605
        %v628 = vmul.f32 %v468, %v606
        %v629 = vmul.f32 %v469, %v606
        %v630 = vmul.f32 %v470, %v607
        %v631 = vmul.f32 %v471, %v607
        %v632 = vmul.f32 %v472, %v608
        %v633 = vmul.f32 %v473, %v608
        %v634 = vmul.f32 %v474, %v609
        %v635 = vmul.f32 %v475, %v609
        %v636 = vmul.f32 %v476, %v610
        %v637 = vmul.f32 %v477, %v610
        %v638 = vmul.f32 %v478, %v611
        %v639 = vmul.f32 %v479, %v611
        %v640 = vmul.f32 %v480, %v612
        %v641 = vmul.f32 %v481, %v612
        %v642 = vmul.f32 %v482, %v613
        %v643 = vmul.f32 %v483, %v613
        %v644 = vmul.f32 %v484, %v614
        %v645 = vmul.f32 %v485, %v614
        %v646 = vmul.f32 %v486, %v615
        %v647 = vmul.f32 %v487, %v615
        %v649 = vlaneseq
        %v650 = vshrl.u32 %v649, 7
        %v651 = vsub.s32 0, %v650
        %v652 = vrot.slane %v389, %v651
        %v653 = vlaneseq
        %v654 = vshrl.u32 %v653, 7
        %v655 = vsub.s32 1, %v654
        %v656 = vrot.slane %v389, %v655
        %v659 = vmul.f32 %v616, %v652
        %v660 = vmul.f32 %v617, %v656
        %v661 = vmul.f32 %v618, %v652
        %v662 = vmul.f32 %v619, %v656
        %v663 = vmul.f32 %v620, %v652
        %v664 = vmul.f32 %v621, %v656
        %v665 = vmul.f32 %v622, %v652
        %v666 = vmul.f32 %v623, %v656
        %v667 = vmul.f32 %v624, %v652
        %v668 = vmul.f32 %v625, %v656
        %v669 = vmul.f32 %v626, %v652
        %v670 = vmul.f32 %v627, %v656
        %v671 = vmul.f32 %v628, %v652
        %v672 = vmul.f32 %v629, %v656
        %v673 = vmul.f32 %v630, %v652
        %v674 = vmul.f32 %v631, %v656
        %v675 = vmul.f32 %v632, %v652
        %v676 = vmul.f32 %v633, %v656
        %v677 = vmul.f32 %v634, %v652
        %v678 = vmul.f32 %v635, %v656
        %v679 = vmul.f32 %v636, %v652
        %v680 = vmul.f32 %v637, %v656
        %v681 = vmul.f32 %v638, %v652
        %v682 = vmul.f32 %v639, %v656
        %v683 = vmul.f32 %v640, %v652
        %v684 = vmul.f32 %v641, %v656
        %v685 = vmul.f32 %v642, %v652
        %v686 = vmul.f32 %v643, %v656
        %v687 = vmul.f32 %v644, %v652
        %v688 = vmul.f32 %v645, %v656
        %v689 = vmul.f32 %v646, %v652
        %v690 = vmul.f32 %v647, %v656
        %v692 = vlaneseq
        %v693 = vshrl.u32 %v692, 7
        %v694 = vsub.s32 0, %v693
        %v695 = vrot.slane %v390, %v694
        %v696 = vlaneseq
        %v697 = vshrl.u32 %v696, 7
        %v698 = vsub.s32 1, %v697
        %v699 = vrot.slane %v390, %v698
        %v702 = vadd.f32 %v659, %v695
        %v703 = vadd.f32 %v660, %v699
        %v704 = vadd.f32 %v661, %v695
        %v705 = vadd.f32 %v662, %v699
        %v706 = vadd.f32 %v663, %v695
        %v707 = vadd.f32 %v664, %v699
        %v708 = vadd.f32 %v665, %v695
        %v709 = vadd.f32 %v666, %v699
        %v710 = vadd.f32 %v667, %v695
        %v711 = vadd.f32 %v668, %v699
        %v712 = vadd.f32 %v669, %v695
        %v713 = vadd.f32 %v670, %v699
        %v714 = vadd.f32 %v671, %v695
        %v715 = vadd.f32 %v672, %v699
        %v716 = vadd.f32 %v673, %v695
        %v717 = vadd.f32 %v674, %v699
        %v718 = vadd.f32 %v675, %v695
        %v719 = vadd.f32 %v676, %v699
        %v720 = vadd.f32 %v677, %v695
        %v721 = vadd.f32 %v678, %v699
        %v722 = vadd.f32 %v679, %v695
        %v723 = vadd.f32 %v680, %v699
        %v724 = vadd.f32 %v681, %v695
        %v725 = vadd.f32 %v682, %v699
        %v726 = vadd.f32 %v683, %v695
        %v727 = vadd.f32 %v684, %v699
        %v728 = vadd.f32 %v685, %v695
        %v729 = vadd.f32 %v686, %v699
        %v730 = vadd.f32 %v687, %v695
        %v731 = vadd.f32 %v688, %v699
        %v732 = vadd.f32 %v689, %v695
        %v733 = vadd.f32 %v690, %v699
        %v734 = vpack.c.bf16 %v704, %v702
        %v735 = vpack.c.bf16 %v705, %v703
        %v736 = vpack.c.bf16 %v708, %v706
        %v737 = vpack.c.bf16 %v709, %v707
        %v738 = vpack.c.bf16 %v712, %v710
        %v739 = vpack.c.bf16 %v713, %v711
        %v740 = vpack.c.bf16 %v716, %v714
        %v741 = vpack.c.bf16 %v717, %v715
        %v742 = vpack.c.bf16 %v720, %v718
        %v743 = vpack.c.bf16 %v721, %v719
        %v744 = vpack.c.bf16 %v724, %v722
        %v745 = vpack.c.bf16 %v725, %v723
        %v746 = vpack.c.bf16 %v728, %v726
        %v747 = vpack.c.bf16 %v729, %v727
        %v748 = vpack.c.bf16 %v732, %v730
        %v749 = vpack.c.bf16 %v733, %v731
        %v750 = vld [vmem:[#allocation5] sm:$0xff]
        %v751 = vld [vmem:[#allocation5 + $0x8] sm:$0xff]
        %v752 = vld [vmem:[#allocation5 + $0x10] sm:$0xff]
        %v753 = vld [vmem:[#allocation5 + $0x18] sm:$0xff]
        %v754 = vld [vmem:[#allocation5 + $0x20] sm:$0xff]
        %v755 = vld [vmem:[#allocation5 + $0x28] sm:$0xff]
        %v756 = vld [vmem:[#allocation5 + $0x30] sm:$0xff]
        %v757 = vld [vmem:[#allocation5 + $0x38] sm:$0xff]
        %v758 = vld [vmem:[#allocation5 + $0x40] sm:$0xff]
        %v759 = vld [vmem:[#allocation5 + $0x48] sm:$0xff]
        %v760 = vld [vmem:[#allocation5 + $0x50] sm:$0xff]
        %v761 = vld [vmem:[#allocation5 + $0x58] sm:$0xff]
        %v762 = vld [vmem:[#allocation5 + $0x60] sm:$0xff]
        %v763 = vld [vmem:[#allocation5 + $0x68] sm:$0xff]
        %v764 = vld [vmem:[#allocation5 + $0x70] sm:$0xff]
        %v765 = vld [vmem:[#allocation5 + $0x78] sm:$0xff]
        %v766 = vld [vmem:[#allocation5 + $0x80] sm:$0xff]
        %v767 = vld [vmem:[#allocation5 + $0x88] sm:$0xff]
        %v768 = vld [vmem:[#allocation5 + $0x90] sm:$0xff]
        %v769 = vld [vmem:[#allocation5 + $0x98] sm:$0xff]
        %v770 = vld [vmem:[#allocation5 + $0xa0] sm:$0xff]
        %v771 = vld [vmem:[#allocation5 + $0xa8] sm:$0xff]
        %v772 = vld [vmem:[#allocation5 + $0xb0] sm:$0xff]
        %v773 = vld [vmem:[#allocation5 + $0xb8] sm:$0xff]
        %v774 = vld [vmem:[#allocation5 + $0xc0] sm:$0xff]
        %v775 = vld [vmem:[#allocation5 + $0xc8] sm:$0xff]
        %v776 = vld [vmem:[#allocation5 + $0xd0] sm:$0xff]
        %v777 = vld [vmem:[#allocation5 + $0xd8] sm:$0xff]
        %v778 = vld [vmem:[#allocation5 + $0xe0] sm:$0xff]
        %v779 = vld [vmem:[#allocation5 + $0xe8] sm:$0xff]
        %v780 = vld [vmem:[#allocation5 + $0xf0] sm:$0xff]
        %v781 = vld [vmem:[#allocation5 + $0xf8] sm:$0xff]
        %v782 = vld [vmem:[#allocation5 + $0x100] sm:$0xff]
        %v783 = vld [vmem:[#allocation5 + $0x108] sm:$0xff]
        %v784 = vld [vmem:[#allocation5 + $0x110] sm:$0xff]
        %v785 = vld [vmem:[#allocation5 + $0x118] sm:$0xff]
        %v786 = vld [vmem:[#allocation5 + $0x120] sm:$0xff]
        %v787 = vld [vmem:[#allocation5 + $0x128] sm:$0xff]
        %v788 = vld [vmem:[#allocation5 + $0x130] sm:$0xff]
        %v789 = vld [vmem:[#allocation5 + $0x138] sm:$0xff]
        %v790 = vld [vmem:[#allocation5 + $0x140] sm:$0xff]
        %v791 = vld [vmem:[#allocation5 + $0x148] sm:$0xff]
        %v792 = vld [vmem:[#allocation5 + $0x150] sm:$0xff]
        %v793 = vld [vmem:[#allocation5 + $0x158] sm:$0xff]
        %v794 = vld [vmem:[#allocation5 + $0x160] sm:$0xff]
        %v795 = vld [vmem:[#allocation5 + $0x168] sm:$0xff]
        %v796 = vld [vmem:[#allocation5 + $0x170] sm:$0xff]
        %v797 = vld [vmem:[#allocation5 + $0x178] sm:$0xff]
        %v798 = vld [vmem:[#allocation5 + $0x180] sm:$0xff]
        %v799 = vld [vmem:[#allocation5 + $0x188] sm:$0xff]
        %v800 = vld [vmem:[#allocation5 + $0x190] sm:$0xff]
        %v801 = vld [vmem:[#allocation5 + $0x198] sm:$0xff]
        %v802 = vld [vmem:[#allocation5 + $0x1a0] sm:$0xff]
        %v803 = vld [vmem:[#allocation5 + $0x1a8] sm:$0xff]
        %v804 = vld [vmem:[#allocation5 + $0x1b0] sm:$0xff]
        %v805 = vld [vmem:[#allocation5 + $0x1b8] sm:$0xff]
        %v806 = vld [vmem:[#allocation5 + $0x1c0] sm:$0xff]
        %v807 = vld [vmem:[#allocation5 + $0x1c8] sm:$0xff]
        %v808 = vld [vmem:[#allocation5 + $0x1d0] sm:$0xff]
        %v809 = vld [vmem:[#allocation5 + $0x1d8] sm:$0xff]
        %v810 = vld [vmem:[#allocation5 + $0x1e0] sm:$0xff]
        %v811 = vld [vmem:[#allocation5 + $0x1e8] sm:$0xff]
        %v812 = vld [vmem:[#allocation5 + $0x1f0] sm:$0xff]
        %v813 = vld [vmem:[#allocation5 + $0x1f8] sm:$0xff]
        %v814 = vld [vmem:[#allocation5 + $0x200] sm:$0xff]
        %v815 = vld [vmem:[#allocation5 + $0x208] sm:$0xff]
        %v816 = vld [vmem:[#allocation5 + $0x210] sm:$0xff]
        %v817 = vld [vmem:[#allocation5 + $0x218] sm:$0xff]
        %v818 = vld [vmem:[#allocation5 + $0x220] sm:$0xff]
        %v819 = vld [vmem:[#allocation5 + $0x228] sm:$0xff]
        %v820 = vld [vmem:[#allocation5 + $0x230] sm:$0xff]
        %v821 = vld [vmem:[#allocation5 + $0x238] sm:$0xff]
        %v822 = vld [vmem:[#allocation5 + $0x240] sm:$0xff]
        %v823 = vld [vmem:[#allocation5 + $0x248] sm:$0xff]
        %v824 = vld [vmem:[#allocation5 + $0x250] sm:$0xff]
        %v825 = vld [vmem:[#allocation5 + $0x258] sm:$0xff]
        %v826 = vld [vmem:[#allocation5 + $0x260] sm:$0xff]
        %v827 = vld [vmem:[#allocation5 + $0x268] sm:$0xff]
        %v828 = vld [vmem:[#allocation5 + $0x270] sm:$0xff]
        %v829 = vld [vmem:[#allocation5 + $0x278] sm:$0xff]
        %v830 = vld [vmem:[#allocation5 + $0x280] sm:$0xff]
        %v831 = vld [vmem:[#allocation5 + $0x288] sm:$0xff]
        %v832 = vld [vmem:[#allocation5 + $0x290] sm:$0xff]
        %v833 = vld [vmem:[#allocation5 + $0x298] sm:$0xff]
        %v834 = vld [vmem:[#allocation5 + $0x2a0] sm:$0xff]
        %v835 = vld [vmem:[#allocation5 + $0x2a8] sm:$0xff]
        %v836 = vld [vmem:[#allocation5 + $0x2b0] sm:$0xff]
        %v837 = vld [vmem:[#allocation5 + $0x2b8] sm:$0xff]
        %v838 = vld [vmem:[#allocation5 + $0x2c0] sm:$0xff]
        %v839 = vld [vmem:[#allocation5 + $0x2c8] sm:$0xff]
        %v840 = vld [vmem:[#allocation5 + $0x2d0] sm:$0xff]
        %v841 = vld [vmem:[#allocation5 + $0x2d8] sm:$0xff]
        %v842 = vld [vmem:[#allocation5 + $0x2e0] sm:$0xff]
        %v843 = vld [vmem:[#allocation5 + $0x2e8] sm:$0xff]
        %v844 = vld [vmem:[#allocation5 + $0x2f0] sm:$0xff]
        %v845 = vld [vmem:[#allocation5 + $0x2f8] sm:$0xff]
        %v846 = vld [vmem:[%s4] sm:$0x3f]
        %v848 = vlaneseq
        %v849 = vshrl.u32 %v848, 7
        %v850 = vsub.s32 0, %v849
        %v851 = vrot.slane %v846, %v850
        %v852 = vlaneseq
        %v853 = vshrl.u32 %v852, 7
        %v854 = vsub.s32 1, %v853
        %v855 = vrot.slane %v846, %v854
        %v856 = vlaneseq
        %v857 = vshrl.u32 %v856, 7
        %v858 = vsub.s32 2, %v857
        %v859 = vrot.slane %v846, %v858
        %v860 = vlaneseq
        %v861 = vshrl.u32 %v860, 7
        %v862 = vsub.s32 3, %v861
        %v863 = vrot.slane %v846, %v862
        %v864 = vlaneseq
        %v865 = vshrl.u32 %v864, 7
        %v866 = vsub.s32 4, %v865
        %v867 = vrot.slane %v846, %v866
        %v868 = vlaneseq
        %v869 = vshrl.u32 %v868, 7
        %v870 = vsub.s32 5, %v869
        %v871 = vrot.slane %v846, %v870
        %v974 = vunpack.c.l.b16 %v750
        %v975 = vunpack.c.h.b16 %v750
        %v976 = vunpack.c.l.b16 %v751
        %v977 = vunpack.c.h.b16 %v751
        %v978 = vunpack.c.l.b16 %v752
        %v979 = vunpack.c.h.b16 %v752
        %v980 = vunpack.c.l.b16 %v753
        %v981 = vunpack.c.h.b16 %v753
        %v982 = vunpack.c.l.b16 %v754
        %v983 = vunpack.c.h.b16 %v754
        %v984 = vunpack.c.l.b16 %v755
        %v985 = vunpack.c.h.b16 %v755
        %v986 = vunpack.c.l.b16 %v756
        %v987 = vunpack.c.h.b16 %v756
        %v988 = vunpack.c.l.b16 %v757
        %v989 = vunpack.c.h.b16 %v757
        %v990 = vunpack.c.l.b16 %v758
        %v991 = vunpack.c.h.b16 %v758
        %v992 = vunpack.c.l.b16 %v759
        %v993 = vunpack.c.h.b16 %v759
        %v994 = vunpack.c.l.b16 %v760
        %v995 = vunpack.c.h.b16 %v760
        %v996 = vunpack.c.l.b16 %v761
        %v997 = vunpack.c.h.b16 %v761
        %v998 = vunpack.c.l.b16 %v762
        %v999 = vunpack.c.h.b16 %v762
        %v1000 = vunpack.c.l.b16 %v763
        %v1001 = vunpack.c.h.b16 %v763
        %v1002 = vunpack.c.l.b16 %v764
        %v1003 = vunpack.c.h.b16 %v764
        %v1004 = vunpack.c.l.b16 %v765
        %v1005 = vunpack.c.h.b16 %v765
        %v1006 = vunpack.c.l.b16 %v766
        %v1007 = vunpack.c.h.b16 %v766
        %v1008 = vunpack.c.l.b16 %v767
        %v1009 = vunpack.c.h.b16 %v767
        %v1010 = vunpack.c.l.b16 %v768
        %v1011 = vunpack.c.h.b16 %v768
        %v1012 = vunpack.c.l.b16 %v769
        %v1013 = vunpack.c.h.b16 %v769
        %v1014 = vunpack.c.l.b16 %v770
        %v1015 = vunpack.c.h.b16 %v770
        %v1016 = vunpack.c.l.b16 %v771
        %v1017 = vunpack.c.h.b16 %v771
        %v1018 = vunpack.c.l.b16 %v772
        %v1019 = vunpack.c.h.b16 %v772
        %v1020 = vunpack.c.l.b16 %v773
        %v1021 = vunpack.c.h.b16 %v773
        %v1022 = vunpack.c.l.b16 %v774
        %v1023 = vunpack.c.h.b16 %v774
        %v1024 = vunpack.c.l.b16 %v775
        %v1025 = vunpack.c.h.b16 %v775
        %v1026 = vunpack.c.l.b16 %v776
        %v1027 = vunpack.c.h.b16 %v776
        %v1028 = vunpack.c.l.b16 %v777
        %v1029 = vunpack.c.h.b16 %v777
        %v1030 = vunpack.c.l.b16 %v778
        %v1031 = vunpack.c.h.b16 %v778
        %v1032 = vunpack.c.l.b16 %v779
        %v1033 = vunpack.c.h.b16 %v779
        %v1034 = vunpack.c.l.b16 %v780
        %v1035 = vunpack.c.h.b16 %v780
        %v1036 = vunpack.c.l.b16 %v781
        %v1037 = vunpack.c.h.b16 %v781
        %v1038 = vunpack.c.l.b16 %v782
        %v1039 = vunpack.c.h.b16 %v782
        %v1040 = vunpack.c.l.b16 %v783
        %v1041 = vunpack.c.h.b16 %v783
        %v1042 = vunpack.c.l.b16 %v784
        %v1043 = vunpack.c.h.b16 %v784
        %v1044 = vunpack.c.l.b16 %v785
        %v1045 = vunpack.c.h.b16 %v785
        %v1046 = vunpack.c.l.b16 %v786
        %v1047 = vunpack.c.h.b16 %v786
        %v1048 = vunpack.c.l.b16 %v787
        %v1049 = vunpack.c.h.b16 %v787
        %v1050 = vunpack.c.l.b16 %v788
        %v1051 = vunpack.c.h.b16 %v788
        %v1052 = vunpack.c.l.b16 %v789
        %v1053 = vunpack.c.h.b16 %v789
        %v1054 = vunpack.c.l.b16 %v790
        %v1055 = vunpack.c.h.b16 %v790
        %v1056 = vunpack.c.l.b16 %v791
        %v1057 = vunpack.c.h.b16 %v791
        %v1058 = vunpack.c.l.b16 %v792
        %v1059 = vunpack.c.h.b16 %v792
        %v1060 = vunpack.c.l.b16 %v793
        %v1061 = vunpack.c.h.b16 %v793
        %v1062 = vunpack.c.l.b16 %v794
        %v1063 = vunpack.c.h.b16 %v794
        %v1064 = vunpack.c.l.b16 %v795
        %v1065 = vunpack.c.h.b16 %v795
        %v1066 = vunpack.c.l.b16 %v796
        %v1067 = vunpack.c.h.b16 %v796
        %v1068 = vunpack.c.l.b16 %v797
        %v1069 = vunpack.c.h.b16 %v797
        %v1070 = vunpack.c.l.b16 %v798
        %v1071 = vunpack.c.h.b16 %v798
        %v1072 = vunpack.c.l.b16 %v799
        %v1073 = vunpack.c.h.b16 %v799
        %v1074 = vunpack.c.l.b16 %v800
        %v1075 = vunpack.c.h.b16 %v800
        %v1076 = vunpack.c.l.b16 %v801
        %v1077 = vunpack.c.h.b16 %v801
        %v1078 = vunpack.c.l.b16 %v802
        %v1079 = vunpack.c.h.b16 %v802
        %v1080 = vunpack.c.l.b16 %v803
        %v1081 = vunpack.c.h.b16 %v803
        %v1082 = vunpack.c.l.b16 %v804
        %v1083 = vunpack.c.h.b16 %v804
        %v1084 = vunpack.c.l.b16 %v805
        %v1085 = vunpack.c.h.b16 %v805
        %v1086 = vunpack.c.l.b16 %v806
        %v1087 = vunpack.c.h.b16 %v806
        %v1088 = vunpack.c.l.b16 %v807
        %v1089 = vunpack.c.h.b16 %v807
        %v1090 = vunpack.c.l.b16 %v808
        %v1091 = vunpack.c.h.b16 %v808
        %v1092 = vunpack.c.l.b16 %v809
        %v1093 = vunpack.c.h.b16 %v809
        %v1094 = vunpack.c.l.b16 %v810
        %v1095 = vunpack.c.h.b16 %v810
        %v1096 = vunpack.c.l.b16 %v811
        %v1097 = vunpack.c.h.b16 %v811
        %v1098 = vunpack.c.l.b16 %v812
        %v1099 = vunpack.c.h.b16 %v812
        %v1100 = vunpack.c.l.b16 %v813
        %v1101 = vunpack.c.h.b16 %v813
        %v1102 = vunpack.c.l.b16 %v814
        %v1103 = vunpack.c.h.b16 %v814
        %v1104 = vunpack.c.l.b16 %v815
        %v1105 = vunpack.c.h.b16 %v815
        %v1106 = vunpack.c.l.b16 %v816
        %v1107 = vunpack.c.h.b16 %v816
        %v1108 = vunpack.c.l.b16 %v817
        %v1109 = vunpack.c.h.b16 %v817
        %v1110 = vunpack.c.l.b16 %v818
        %v1111 = vunpack.c.h.b16 %v818
        %v1112 = vunpack.c.l.b16 %v819
        %v1113 = vunpack.c.h.b16 %v819
        %v1114 = vunpack.c.l.b16 %v820
        %v1115 = vunpack.c.h.b16 %v820
        %v1116 = vunpack.c.l.b16 %v821
        %v1117 = vunpack.c.h.b16 %v821
        %v1118 = vunpack.c.l.b16 %v822
        %v1119 = vunpack.c.h.b16 %v822
        %v1120 = vunpack.c.l.b16 %v823
        %v1121 = vunpack.c.h.b16 %v823
        %v1122 = vunpack.c.l.b16 %v824
        %v1123 = vunpack.c.h.b16 %v824
        %v1124 = vunpack.c.l.b16 %v825
        %v1125 = vunpack.c.h.b16 %v825
        %v1126 = vunpack.c.l.b16 %v826
        %v1127 = vunpack.c.h.b16 %v826
        %v1128 = vunpack.c.l.b16 %v827
        %v1129 = vunpack.c.h.b16 %v827
        %v1130 = vunpack.c.l.b16 %v828
        %v1131 = vunpack.c.h.b16 %v828
        %v1132 = vunpack.c.l.b16 %v829
        %v1133 = vunpack.c.h.b16 %v829
        %v1134 = vunpack.c.l.b16 %v830
        %v1135 = vunpack.c.h.b16 %v830
        %v1136 = vunpack.c.l.b16 %v831
        %v1137 = vunpack.c.h.b16 %v831
        %v1138 = vunpack.c.l.b16 %v832
        %v1139 = vunpack.c.h.b16 %v832
        %v1140 = vunpack.c.l.b16 %v833
        %v1141 = vunpack.c.h.b16 %v833
        %v1142 = vunpack.c.l.b16 %v834
        %v1143 = vunpack.c.h.b16 %v834
        %v1144 = vunpack.c.l.b16 %v835
        %v1145 = vunpack.c.h.b16 %v835
        %v1146 = vunpack.c.l.b16 %v836
        %v1147 = vunpack.c.h.b16 %v836
        %v1148 = vunpack.c.l.b16 %v837
        %v1149 = vunpack.c.h.b16 %v837
        %v1150 = vunpack.c.l.b16 %v838
        %v1151 = vunpack.c.h.b16 %v838
        %v1152 = vunpack.c.l.b16 %v839
        %v1153 = vunpack.c.h.b16 %v839
        %v1154 = vunpack.c.l.b16 %v840
        %v1155 = vunpack.c.h.b16 %v840
        %v1156 = vunpack.c.l.b16 %v841
        %v1157 = vunpack.c.h.b16 %v841
        %v1158 = vunpack.c.l.b16 %v842
        %v1159 = vunpack.c.h.b16 %v842
        %v1160 = vunpack.c.l.b16 %v843
        %v1161 = vunpack.c.h.b16 %v843
        %v1162 = vunpack.c.l.b16 %v844
        %v1163 = vunpack.c.h.b16 %v844
        %v1164 = vunpack.c.l.b16 %v845
        %v1165 = vunpack.c.h.b16 %v845
        %v1166 = vpack.c.b16 %v980, %v974
        %v1167 = vpack.c.b16 %v981, %v975
        %v1168 = vpack.c.b16 %v982, %v976
        %v1169 = vpack.c.b16 %v983, %v977
        %v1170 = vpack.c.b16 %v984, %v978
        %v1171 = vpack.c.b16 %v985, %v979
        %v1172 = vpack.c.b16 %v992, %v986
        %v1173 = vpack.c.b16 %v993, %v987
        %v1174 = vpack.c.b16 %v994, %v988
        %v1175 = vpack.c.b16 %v995, %v989
        %v1176 = vpack.c.b16 %v996, %v990
        %v1177 = vpack.c.b16 %v997, %v991
        %v1178 = vpack.c.b16 %v1004, %v998
        %v1179 = vpack.c.b16 %v1005, %v999
        %v1180 = vpack.c.b16 %v1006, %v1000
        %v1181 = vpack.c.b16 %v1007, %v1001
        %v1182 = vpack.c.b16 %v1008, %v1002
        %v1183 = vpack.c.b16 %v1009, %v1003
        %v1184 = vpack.c.b16 %v1016, %v1010
        %v1185 = vpack.c.b16 %v1017, %v1011
        %v1186 = vpack.c.b16 %v1018, %v1012
        %v1187 = vpack.c.b16 %v1019, %v1013
        %v1188 = vpack.c.b16 %v1020, %v1014
        %v1189 = vpack.c.b16 %v1021, %v1015
        %v1190 = vpack.c.b16 %v1028, %v1022
        %v1191 = vpack.c.b16 %v1029, %v1023
        %v1192 = vpack.c.b16 %v1030, %v1024
        %v1193 = vpack.c.b16 %v1031, %v1025
        %v1194 = vpack.c.b16 %v1032, %v1026
        %v1195 = vpack.c.b16 %v1033, %v1027
        %v1196 = vpack.c.b16 %v1040, %v1034
        %v1197 = vpack.c.b16 %v1041, %v1035
        %v1198 = vpack.c.b16 %v1042, %v1036
        %v1199 = vpack.c.b16 %v1043, %v1037
        %v1200 = vpack.c.b16 %v1044, %v1038
        %v1201 = vpack.c.b16 %v1045, %v1039
        %v1202 = vpack.c.b16 %v1052, %v1046
        %v1203 = vpack.c.b16 %v1053, %v1047
        %v1204 = vpack.c.b16 %v1054, %v1048
        %v1205 = vpack.c.b16 %v1055, %v1049
        %v1206 = vpack.c.b16 %v1056, %v1050
        %v1207 = vpack.c.b16 %v1057, %v1051
        %v1208 = vpack.c.b16 %v1064, %v1058
        %v1209 = vpack.c.b16 %v1065, %v1059
        %v1210 = vpack.c.b16 %v1066, %v1060
        %v1211 = vpack.c.b16 %v1067, %v1061
        %v1212 = vpack.c.b16 %v1068, %v1062
        %v1213 = vpack.c.b16 %v1069, %v1063
        %v1214 = vpack.c.b16 %v1076, %v1070
        %v1215 = vpack.c.b16 %v1077, %v1071
        %v1216 = vpack.c.b16 %v1078, %v1072
        %v1217 = vpack.c.b16 %v1079, %v1073
        %v1218 = vpack.c.b16 %v1080, %v1074
        %v1219 = vpack.c.b16 %v1081, %v1075
        %v1220 = vpack.c.b16 %v1088, %v1082
        %v1221 = vpack.c.b16 %v1089, %v1083
        %v1222 = vpack.c.b16 %v1090, %v1084
        %v1223 = vpack.c.b16 %v1091, %v1085
        %v1224 = vpack.c.b16 %v1092, %v1086
        %v1225 = vpack.c.b16 %v1093, %v1087
        %v1226 = vpack.c.b16 %v1100, %v1094
        %v1227 = vpack.c.b16 %v1101, %v1095
        %v1228 = vpack.c.b16 %v1102, %v1096
        %v1229 = vpack.c.b16 %v1103, %v1097
        %v1230 = vpack.c.b16 %v1104, %v1098
        %v1231 = vpack.c.b16 %v1105, %v1099
        %v1232 = vpack.c.b16 %v1112, %v1106
        %v1233 = vpack.c.b16 %v1113, %v1107
        %v1234 = vpack.c.b16 %v1114, %v1108
        %v1235 = vpack.c.b16 %v1115, %v1109
        %v1236 = vpack.c.b16 %v1116, %v1110
        %v1237 = vpack.c.b16 %v1117, %v1111
        %v1238 = vpack.c.b16 %v1124, %v1118
        %v1239 = vpack.c.b16 %v1125, %v1119
        %v1240 = vpack.c.b16 %v1126, %v1120
        %v1241 = vpack.c.b16 %v1127, %v1121
        %v1242 = vpack.c.b16 %v1128, %v1122
        %v1243 = vpack.c.b16 %v1129, %v1123
        %v1244 = vpack.c.b16 %v1136, %v1130
        %v1245 = vpack.c.b16 %v1137, %v1131
        %v1246 = vpack.c.b16 %v1138, %v1132
        %v1247 = vpack.c.b16 %v1139, %v1133
        %v1248 = vpack.c.b16 %v1140, %v1134
        %v1249 = vpack.c.b16 %v1141, %v1135
        %v1250 = vpack.c.b16 %v1148, %v1142
        %v1251 = vpack.c.b16 %v1149, %v1143
        %v1252 = vpack.c.b16 %v1150, %v1144
        %v1253 = vpack.c.b16 %v1151, %v1145
        %v1254 = vpack.c.b16 %v1152, %v1146
        %v1255 = vpack.c.b16 %v1153, %v1147
        %v1256 = vpack.c.b16 %v1160, %v1154
        %v1257 = vpack.c.b16 %v1161, %v1155
        %v1258 = vpack.c.b16 %v1162, %v1156
        %v1259 = vpack.c.b16 %v1163, %v1157
        %v1260 = vpack.c.b16 %v1164, %v1158
        %v1261 = vpack.c.b16 %v1165, %v1159
        %1358 = vmatprep.subr.bf16.mxu0 %v1167
        %1359 = vmatpush1.bf16.msra.mxu0 %v1166
        %1360 = vmatprep.subr.bf16.mxu0 %v1173
        %1361 = vmatpush1.bf16.msra.mxu0 %v1172
        %1362 = vmatprep.subr.bf16.mxu0 %v1179
        %1363 = vmatpush1.bf16.msra.mxu0 %v1178
        %1364 = vmatprep.subr.bf16.mxu0 %v1185
        %1365 = vmatpush1.bf16.msra.mxu0 %v1184
        %1366 = vmatprep.subr.bf16.mxu0 %v1191
        %1367 = vmatpush1.bf16.msra.mxu0 %v1190
        %1368 = vmatprep.subr.bf16.mxu0 %v1197
        %1369 = vmatpush1.bf16.msra.mxu0 %v1196
        %1370 = vmatprep.subr.bf16.mxu0 %v1203
        %1371 = vmatpush1.bf16.msra.mxu0 %v1202
        %1372 = vmatprep.subr.bf16.mxu0 %v1209
        %1373 = vmatpush1.bf16.msra.mxu0 %v1208
        %1374 = vmatprep.subr.bf16.mxu0 %v1215
        %1375 = vmatpush1.bf16.msra.mxu0 %v1214
        %1376 = vmatprep.subr.bf16.mxu0 %v1221
        %1377 = vmatpush1.bf16.msra.mxu0 %v1220
        %1378 = vmatprep.subr.bf16.mxu0 %v1227
        %1379 = vmatpush1.bf16.msra.mxu0 %v1226
        %1380 = vmatprep.subr.bf16.mxu0 %v1233
        %1381 = vmatpush1.bf16.msra.mxu0 %v1232
        %1382 = vmatprep.subr.bf16.mxu0 %v1239
        %1383 = vmatpush1.bf16.msra.mxu0 %v1238
        %1384 = vmatprep.subr.bf16.mxu0 %v1245
        %1385 = vmatpush1.bf16.msra.mxu0 %v1244
        %1386 = vmatprep.subr.bf16.mxu0 %v1251
        %1387 = vmatpush1.bf16.msra.mxu0 %v1250
        %1388 = vmatprep.subr.bf16.mxu0 %v1257
        %1389 = vmatpush1.bf16.msra.mxu0 %v1256
        %1390 = vmatprep.mubr.bf16.mxu0 %v735
        %1391 = vmatmul.mubr.bf16.gmra.mrb[0].mxu0 %v734
        %v1392 = vpop.f32.mrb[0].mxu0
        %v1393 = vadd.f32 %v851, %v1392
        %v1394 = vpop.f32.mrb[0].mxu0
        %v1395 = vadd.f32 %v855, %v1394
        %v1396 = vpop.f32.mrb[0].mxu0
        %v1397 = vadd.f32 %v851, %v1396
        %v1398 = vpop.f32.mrb[0].mxu0
        %v1399 = vadd.f32 %v855, %v1398
        %1400 = vmatprep.mubr.bf16.mxu0 %v737
        %1401 = vmatmul.mubr.bf16.gmra.mrb[0].mxu0 %v736
        %v1402 = vpop.f32.mrb[0].mxu0
        %v1403 = vadd.f32 %v851, %v1402
        %v1404 = vpop.f32.mrb[0].mxu0
        %v1405 = vadd.f32 %v855, %v1404
        %v1406 = vpop.f32.mrb[0].mxu0
        %v1407 = vadd.f32 %v851, %v1406
        %v1408 = vpop.f32.mrb[0].mxu0
        %v1409 = vadd.f32 %v855, %v1408
        %1410 = vmatprep.mubr.bf16.mxu0 %v739
        %1411 = vmatmul.mubr.bf16.gmra.mrb[0].mxu0 %v738
        %v1412 = vpop.f32.mrb[0].mxu0
        %v1413 = vadd.f32 %v851, %v1412
        %v1414 = vpop.f32.mrb[0].mxu0
        %v1415 = vadd.f32 %v855, %v1414
        %v1416 = vpop.f32.mrb[0].mxu0
        %v1417 = vadd.f32 %v851, %v1416
        %v1418 = vpop.f32.mrb[0].mxu0
        %v1419 = vadd.f32 %v855, %v1418
        %1420 = vmatprep.mubr.bf16.mxu0 %v741
        %1421 = vmatmul.mubr.bf16.gmra.mrb[0].mxu0 %v740
        %v1422 = vpop.f32.mrb[0].mxu0
        %v1423 = vadd.f32 %v851, %v1422
        %v1424 = vpop.f32.mrb[0].mxu0
        %v1425 = vadd.f32 %v855, %v1424
        %v1426 = vpop.f32.mrb[0].mxu0
        %v1427 = vadd.f32 %v851, %v1426
        %v1428 = vpop.f32.mrb[0].mxu0
        %v1429 = vadd.f32 %v855, %v1428
        %1430 = vmatprep.mubr.bf16.mxu0 %v743
        %1431 = vmatmul.mubr.bf16.gmra.mrb[0].mxu0 %v742
        %v1432 = vpop.f32.mrb[0].mxu0
        %v1433 = vadd.f32 %v851, %v1432
        %v1434 = vpop.f32.mrb[0].mxu0
        %v1435 = vadd.f32 %v855, %v1434
        %v1436 = vpop.f32.mrb[0].mxu0
        %v1437 = vadd.f32 %v851, %v1436
        %v1438 = vpop.f32.mrb[0].mxu0
        %v1439 = vadd.f32 %v855, %v1438
        %1440 = vmatprep.mubr.bf16.mxu0 %v745
        %1441 = vmatmul.mubr.bf16.gmra.mrb[0].mxu0 %v744
        %v1442 = vpop.f32.mrb[0].mxu0
        %v1443 = vadd.f32 %v851, %v1442
        %v1444 = vpop.f32.mrb[0].mxu0
        %v1445 = vadd.f32 %v855, %v1444
        %v1446 = vpop.f32.mrb[0].mxu0
        %v1447 = vadd.f32 %v851, %v1446
        %v1448 = vpop.f32.mrb[0].mxu0
        %v1449 = vadd.f32 %v855, %v1448
        %1450 = vmatprep.mubr.bf16.mxu0 %v747
        %1451 = vmatmul.mubr.bf16.gmra.mrb[0].mxu0 %v746
        %v1452 = vpop.f32.mrb[0].mxu0
        %v1453 = vadd.f32 %v851, %v1452
        %v1454 = vpop.f32.mrb[0].mxu0
        %v1455 = vadd.f32 %v855, %v1454
        %v1456 = vpop.f32.mrb[0].mxu0
        %v1457 = vadd.f32 %v851, %v1456
        %v1458 = vpop.f32.mrb[0].mxu0
        %v1459 = vadd.f32 %v855, %v1458
        %1460 = vmatprep.mubr.bf16.mxu0 %v749
        %1461 = vmatmul.mubr.bf16.gmra.mrb[0].mxu0 %v748
        %v1462 = vpop.f32.mrb[0].mxu0
        %v1463 = vadd.f32 %v851, %v1462
        %v1464 = vpop.f32.mrb[0].mxu0
        %v1465 = vadd.f32 %v855, %v1464
        %v1466 = vpop.f32.mrb[0].mxu0
        %v1467 = vadd.f32 %v851, %v1466
        %v1468 = vpop.f32.mrb[0].mxu0
        %v1469 = vadd.f32 %v855, %v1468
        %1470 = vdwg.mxu0
        %1471 = vmatprep.subr.bf16.mxu0 %v1169
        %1472 = vmatpush1.bf16.msra.mxu0 %v1168
        %1473 = vmatprep.subr.bf16.mxu0 %v1175
        %1474 = vmatpush1.bf16.msra.mxu0 %v1174
        %1475 = vmatprep.subr.bf16.mxu0 %v1181
        %1476 = vmatpush1.bf16.msra.mxu0 %v1180
        %1477 = vmatprep.subr.bf16.mxu0 %v1187
        %1478 = vmatpush1.bf16.msra.mxu0 %v1186
        %1479 = vmatprep.subr.bf16.mxu0 %v1193
        %1480 = vmatpush1.bf16.msra.mxu0 %v1192
        %1481 = vmatprep.subr.bf16.mxu0 %v1199
        %1482 = vmatpush1.bf16.msra.mxu0 %v1198
        %1483 = vmatprep.subr.bf16.mxu0 %v1205
        %1484 = vmatpush1.bf16.msra.mxu0 %v1204
        %1485 = vmatprep.subr.bf16.mxu0 %v1211
        %1486 = vmatpush1.bf16.msra.mxu0 %v1210
        %1487 = vmatprep.subr.bf16.mxu0 %v1217
        %1488 = vmatpush1.bf16.msra.mxu0 %v1216
        %1489 = vmatprep.subr.bf16.mxu0 %v1223
        %1490 = vmatpush1.bf16.msra.mxu0 %v1222
        %1491 = vmatprep.subr.bf16.mxu0 %v1229
        %1492 = vmatpush1.bf16.msra.mxu0 %v1228
        %1493 = vmatprep.subr.bf16.mxu0 %v1235
        %1494 = vmatpush1.bf16.msra.mxu0 %v1234
        %1495 = vmatprep.subr.bf16.mxu0 %v1241
        %1496 = vmatpush1.bf16.msra.mxu0 %v1240
        %1497 = vmatprep.subr.bf16.mxu0 %v1247
        %1498 = vmatpush1.bf16.msra.mxu0 %v1246
        %1499 = vmatprep.subr.bf16.mxu0 %v1253
        %1500 = vmatpush1.bf16.msra.mxu0 %v1252
        %1501 = vmatprep.subr.bf16.mxu0 %v1259
        %1502 = vmatpush1.bf16.msra.mxu0 %v1258
        %1503 = vmatprep.mubr.bf16.mxu0 %v735
        %1504 = vmatmul.mubr.bf16.gmra.mrb[0].mxu0 %v734
        %v1505 = vpop.f32.mrb[0].mxu0
        %v1506 = vadd.f32 %v859, %v1505
        %v1507 = vpop.f32.mrb[0].mxu0
        %v1508 = vadd.f32 %v863, %v1507
        %v1509 = vpop.f32.mrb[0].mxu0
        %v1510 = vadd.f32 %v859, %v1509
        %v1511 = vpop.f32.mrb[0].mxu0
        %v1512 = vadd.f32 %v863, %v1511
        %1513 = vmatprep.mubr.bf16.mxu0 %v737
        %1514 = vmatmul.mubr.bf16.gmra.mrb[0].mxu0 %v736
        %v1515 = vpop.f32.mrb[0].mxu0
        %v1516 = vadd.f32 %v859, %v1515
        %v1517 = vpop.f32.mrb[0].mxu0
        %v1518 = vadd.f32 %v863, %v1517
        %v1519 = vpop.f32.mrb[0].mxu0
        %v1520 = vadd.f32 %v859, %v1519
        %v1521 = vpop.f32.mrb[0].mxu0
        %v1522 = vadd.f32 %v863, %v1521
        %1523 = vmatprep.mubr.bf16.mxu0 %v739
        %1524 = vmatmul.mubr.bf16.gmra.mrb[0].mxu0 %v738
        %v1525 = vpop.f32.mrb[0].mxu0
        %v1526 = vadd.f32 %v859, %v1525
        %v1527 = vpop.f32.mrb[0].mxu0
        %v1528 = vadd.f32 %v863, %v1527
        %v1529 = vpop.f32.mrb[0].mxu0
        %v1530 = vadd.f32 %v859, %v1529
        %v1531 = vpop.f32.mrb[0].mxu0
        %v1532 = vadd.f32 %v863, %v1531
        %1533 = vmatprep.mubr.bf16.mxu0 %v741
        %1534 = vmatmul.mubr.bf16.gmra.mrb[0].mxu0 %v740
        %v1535 = vpop.f32.mrb[0].mxu0
        %v1536 = vadd.f32 %v859, %v1535
        %v1537 = vpop.f32.mrb[0].mxu0
        %v1538 = vadd.f32 %v863, %v1537
        %v1539 = vpop.f32.mrb[0].mxu0
        %v1540 = vadd.f32 %v859, %v1539
        %v1541 = vpop.f32.mrb[0].mxu0
        %v1542 = vadd.f32 %v863, %v1541
        %1543 = vmatprep.mubr.bf16.mxu0 %v743
        %1544 = vmatmul.mubr.bf16.gmra.mrb[0].mxu0 %v742
        %v1545 = vpop.f32.mrb[0].mxu0
        %v1546 = vadd.f32 %v859, %v1545
        %v1547 = vpop.f32.mrb[0].mxu0
        %v1548 = vadd.f32 %v863, %v1547
        %v1549 = vpop.f32.mrb[0].mxu0
        %v1550 = vadd.f32 %v859, %v1549
        %v1551 = vpop.f32.mrb[0].mxu0
        %v1552 = vadd.f32 %v863, %v1551
        %1553 = vmatprep.mubr.bf16.mxu0 %v745
        %1554 = vmatmul.mubr.bf16.gmra.mrb[0].mxu0 %v744
        %v1555 = vpop.f32.mrb[0].mxu0
        %v1556 = vadd.f32 %v859, %v1555
        %v1557 = vpop.f32.mrb[0].mxu0
        %v1558 = vadd.f32 %v863, %v1557
        %v1559 = vpop.f32.mrb[0].mxu0
        %v1560 = vadd.f32 %v859, %v1559
        %v1561 = vpop.f32.mrb[0].mxu0
        %v1562 = vadd.f32 %v863, %v1561
        %1563 = vmatprep.mubr.bf16.mxu0 %v747
        %1564 = vmatmul.mubr.bf16.gmra.mrb[0].mxu0 %v746
        %v1565 = vpop.f32.mrb[0].mxu0
        %v1566 = vadd.f32 %v859, %v1565
        %v1567 = vpop.f32.mrb[0].mxu0
        %v1568 = vadd.f32 %v863, %v1567
        %v1569 = vpop.f32.mrb[0].mxu0
        %v1570 = vadd.f32 %v859, %v1569
        %v1571 = vpop.f32.mrb[0].mxu0
        %v1572 = vadd.f32 %v863, %v1571
        %1573 = vmatprep.mubr.bf16.mxu0 %v749
        %1574 = vmatmul.mubr.bf16.gmra.mrb[0].mxu0 %v748
        %v1575 = vpop.f32.mrb[0].mxu0
        %v1576 = vadd.f32 %v859, %v1575
        %v1577 = vpop.f32.mrb[0].mxu0
        %v1578 = vadd.f32 %v863, %v1577
        %v1579 = vpop.f32.mrb[0].mxu0
        %v1580 = vadd.f32 %v859, %v1579
        %v1581 = vpop.f32.mrb[0].mxu0
        %v1582 = vadd.f32 %v863, %v1581
        %1583 = vdwg.mxu0
        %1584 = vmatprep.subr.bf16.mxu0 %v1171
        %1585 = vmatpush1.bf16.msra.mxu0 %v1170
        %1586 = vmatprep.subr.bf16.mxu0 %v1177
        %1587 = vmatpush1.bf16.msra.mxu0 %v1176
        %1588 = vmatprep.subr.bf16.mxu0 %v1183
        %1589 = vmatpush1.bf16.msra.mxu0 %v1182
        %1590 = vmatprep.subr.bf16.mxu0 %v1189
        %1591 = vmatpush1.bf16.msra.mxu0 %v1188
        %1592 = vmatprep.subr.bf16.mxu0 %v1195
        %1593 = vmatpush1.bf16.msra.mxu0 %v1194
        %1594 = vmatprep.subr.bf16.mxu0 %v1201
        %1595 = vmatpush1.bf16.msra.mxu0 %v1200
        %1596 = vmatprep.subr.bf16.mxu0 %v1207
        %1597 = vmatpush1.bf16.msra.mxu0 %v1206
        %1598 = vmatprep.subr.bf16.mxu0 %v1213
        %1599 = vmatpush1.bf16.msra.mxu0 %v1212
        %1600 = vmatprep.subr.bf16.mxu0 %v1219
        %1601 = vmatpush1.bf16.msra.mxu0 %v1218
        %1602 = vmatprep.subr.bf16.mxu0 %v1225
        %1603 = vmatpush1.bf16.msra.mxu0 %v1224
        %1604 = vmatprep.subr.bf16.mxu0 %v1231
        %1605 = vmatpush1.bf16.msra.mxu0 %v1230
        %1606 = vmatprep.subr.bf16.mxu0 %v1237
        %1607 = vmatpush1.bf16.msra.mxu0 %v1236
        %1608 = vmatprep.subr.bf16.mxu0 %v1243
        %1609 = vmatpush1.bf16.msra.mxu0 %v1242
        %1610 = vmatprep.subr.bf16.mxu0 %v1249
        %1611 = vmatpush1.bf16.msra.mxu0 %v1248
        %1612 = vmatprep.subr.bf16.mxu0 %v1255
        %1613 = vmatpush1.bf16.msra.mxu0 %v1254
        %1614 = vmatprep.subr.bf16.mxu0 %v1261
        %1615 = vmatpush1.bf16.msra.mxu0 %v1260
        %1616 = vmatprep.mubr.bf16.mxu0 %v735
        %1617 = vmatmul.mubr.bf16.gmra.mrb[0].mxu0 %v734
        %v1618 = vpop.f32.mrb[0].mxu0
        %v1619 = vadd.f32 %v867, %v1618
        %v1620 = vpop.f32.mrb[0].mxu0
        %v1621 = vadd.f32 %v871, %v1620
        %v1622 = vpop.f32.mrb[0].mxu0
        %v1623 = vadd.f32 %v867, %v1622
        %v1624 = vpop.f32.mrb[0].mxu0
        %v1625 = vadd.f32 %v871, %v1624
        %1626 = vmatprep.mubr.bf16.mxu0 %v737
        %1627 = vmatmul.mubr.bf16.gmra.mrb[0].mxu0 %v736
        %v1628 = vpop.f32.mrb[0].mxu0
        %v1629 = vadd.f32 %v867, %v1628
        %v1630 = vpop.f32.mrb[0].mxu0
        %v1631 = vadd.f32 %v871, %v1630
        %v1632 = vpop.f32.mrb[0].mxu0
        %v1633 = vadd.f32 %v867, %v1632
        %v1634 = vpop.f32.mrb[0].mxu0
        %v1635 = vadd.f32 %v871, %v1634
        %1636 = vmatprep.mubr.bf16.mxu0 %v739
        %1637 = vmatmul.mubr.bf16.gmra.mrb[0].mxu0 %v738
        %v1638 = vpop.f32.mrb[0].mxu0
        %v1639 = vadd.f32 %v867, %v1638
        %v1640 = vpop.f32.mrb[0].mxu0
        %v1641 = vadd.f32 %v871, %v1640
        %v1642 = vpop.f32.mrb[0].mxu0
        %v1643 = vadd.f32 %v867, %v1642
        %v1644 = vpop.f32.mrb[0].mxu0
        %v1645 = vadd.f32 %v871, %v1644
        %1646 = vmatprep.mubr.bf16.mxu0 %v741
        %1647 = vmatmul.mubr.bf16.gmra.mrb[0].mxu0 %v740
        %v1648 = vpop.f32.mrb[0].mxu0
        %v1649 = vadd.f32 %v867, %v1648
        %v1650 = vpop.f32.mrb[0].mxu0
        %v1651 = vadd.f32 %v871, %v1650
        %v1652 = vpop.f32.mrb[0].mxu0
        %v1653 = vadd.f32 %v867, %v1652
        %v1654 = vpop.f32.mrb[0].mxu0
        %v1655 = vadd.f32 %v871, %v1654
        %1656 = vmatprep.mubr.bf16.mxu0 %v743
        %1657 = vmatmul.mubr.bf16.gmra.mrb[0].mxu0 %v742
        %v1658 = vpop.f32.mrb[0].mxu0
        %v1659 = vadd.f32 %v867, %v1658
        %v1660 = vpop.f32.mrb[0].mxu0
        %v1661 = vadd.f32 %v871, %v1660
        %v1662 = vpop.f32.mrb[0].mxu0
        %v1663 = vadd.f32 %v867, %v1662
        %v1664 = vpop.f32.mrb[0].mxu0
        %v1665 = vadd.f32 %v871, %v1664
        %1666 = vmatprep.mubr.bf16.mxu0 %v745
        %1667 = vmatmul.mubr.bf16.gmra.mrb[0].mxu0 %v744
        %v1668 = vpop.f32.mrb[0].mxu0
        %v1669 = vadd.f32 %v867, %v1668
        %v1670 = vpop.f32.mrb[0].mxu0
        %v1671 = vadd.f32 %v871, %v1670
        %v1672 = vpop.f32.mrb[0].mxu0
        %v1673 = vadd.f32 %v867, %v1672
        %v1674 = vpop.f32.mrb[0].mxu0
        %v1675 = vadd.f32 %v871, %v1674
        %1676 = vmatprep.mubr.bf16.mxu0 %v747
        %1677 = vmatmul.mubr.bf16.gmra.mrb[0].mxu0 %v746
        %v1678 = vpop.f32.mrb[0].mxu0
        %v1679 = vadd.f32 %v867, %v1678
        %v1680 = vpop.f32.mrb[0].mxu0
        %v1681 = vadd.f32 %v871, %v1680
        %v1682 = vpop.f32.mrb[0].mxu0
        %v1683 = vadd.f32 %v867, %v1682
        %v1684 = vpop.f32.mrb[0].mxu0
        %v1685 = vadd.f32 %v871, %v1684
        %1686 = vmatprep.mubr.bf16.mxu0 %v749
        %1687 = vmatmul.mubr.bf16.gmra.mrb[0].mxu0 %v748
        %v1688 = vpop.f32.mrb[0].mxu0
        %v1689 = vadd.f32 %v867, %v1688
        %v1690 = vpop.f32.mrb[0].mxu0
        %v1691 = vadd.f32 %v871, %v1690
        %v1692 = vpop.f32.mrb[0].mxu0
        %v1693 = vadd.f32 %v867, %v1692
        %v1694 = vpop.f32.mrb[0].mxu0
        %v1695 = vadd.f32 %v871, %v1694
        %1696 = vdwg.mxu0
        %v1697 = vpack.c.bf16 %v1397, %v1393
        %v1698 = vpack.c.bf16 %v1399, %v1395
        %v1699 = vpack.c.bf16 %v1510, %v1506
        %v1700 = vpack.c.bf16 %v1512, %v1508
        %v1701 = vpack.c.bf16 %v1623, %v1619
        %v1702 = vpack.c.bf16 %v1625, %v1621
        %v1703 = vpack.c.bf16 %v1407, %v1403
        %v1704 = vpack.c.bf16 %v1409, %v1405
        %v1705 = vpack.c.bf16 %v1520, %v1516
        %v1706 = vpack.c.bf16 %v1522, %v1518
        %v1707 = vpack.c.bf16 %v1633, %v1629
        %v1708 = vpack.c.bf16 %v1635, %v1631
        %v1709 = vpack.c.bf16 %v1417, %v1413
        %v1710 = vpack.c.bf16 %v1419, %v1415
        %v1711 = vpack.c.bf16 %v1530, %v1526
        %v1712 = vpack.c.bf16 %v1532, %v1528
        %v1713 = vpack.c.bf16 %v1643, %v1639
        %v1714 = vpack.c.bf16 %v1645, %v1641
        %v1715 = vpack.c.bf16 %v1427, %v1423
        %v1716 = vpack.c.bf16 %v1429, %v1425
        %v1717 = vpack.c.bf16 %v1540, %v1536
        %v1718 = vpack.c.bf16 %v1542, %v1538
        %v1719 = vpack.c.bf16 %v1653, %v1649
        %v1720 = vpack.c.bf16 %v1655, %v1651
        %v1721 = vpack.c.bf16 %v1437, %v1433
        %v1722 = vpack.c.bf16 %v1439, %v1435
        %v1723 = vpack.c.bf16 %v1550, %v1546
        %v1724 = vpack.c.bf16 %v1552, %v1548
        %v1725 = vpack.c.bf16 %v1663, %v1659
        %v1726 = vpack.c.bf16 %v1665, %v1661
        %v1727 = vpack.c.bf16 %v1447, %v1443
        %v1728 = vpack.c.bf16 %v1449, %v1445
        %v1729 = vpack.c.bf16 %v1560, %v1556
        %v1730 = vpack.c.bf16 %v1562, %v1558
        %v1731 = vpack.c.bf16 %v1673, %v1669
        %v1732 = vpack.c.bf16 %v1675, %v1671
        %v1733 = vpack.c.bf16 %v1457, %v1453
        %v1734 = vpack.c.bf16 %v1459, %v1455
        %v1735 = vpack.c.bf16 %v1570, %v1566
        %v1736 = vpack.c.bf16 %v1572, %v1568
        %v1737 = vpack.c.bf16 %v1683, %v1679
        %v1738 = vpack.c.bf16 %v1685, %v1681
        %v1739 = vpack.c.bf16 %v1467, %v1463
        %v1740 = vpack.c.bf16 %v1469, %v1465
        %v1741 = vpack.c.bf16 %v1580, %v1576
        %v1742 = vpack.c.bf16 %v1582, %v1578
        %v1743 = vpack.c.bf16 %v1693, %v1689
        %v1744 = vpack.c.bf16 %v1695, %v1691
        %v1753 = vunpack.c.l.b16 %v1697
        %v1754 = vunpack.c.h.b16 %v1697
        %v1755 = vunpack.c.l.b16 %v1703
        %v1756 = vunpack.c.h.b16 %v1703
        %v1757 = vunpack.c.l.b16 %v1709
        %v1758 = vunpack.c.h.b16 %v1709
        %v1759 = vunpack.c.l.b16 %v1715
        %v1760 = vunpack.c.h.b16 %v1715
        %v1761 = vunpack.c.l.b16 %v1721
        %v1762 = vunpack.c.h.b16 %v1721
        %v1763 = vunpack.c.l.b16 %v1727
        %v1764 = vunpack.c.h.b16 %v1727
        %v1765 = vunpack.c.l.b16 %v1733
        %v1766 = vunpack.c.h.b16 %v1733
        %v1767 = vunpack.c.l.b16 %v1739
        %v1768 = vunpack.c.h.b16 %v1739
        %v1769 = vpack.c.b16 %v1753, %v1753
        %v1770 = vpack.c.b16 %v1754, %v1754
        %v1771 = vpack.c.b16 %v1755, %v1755
        %v1772 = vpack.c.b16 %v1756, %v1756
        %v1773 = vpack.c.b16 %v1757, %v1757
        %v1774 = vpack.c.b16 %v1758, %v1758
        %v1775 = vpack.c.b16 %v1759, %v1759
        %v1776 = vpack.c.b16 %v1760, %v1760
        %v1777 = vpack.c.b16 %v1761, %v1761
        %v1778 = vpack.c.b16 %v1762, %v1762
        %v1779 = vpack.c.b16 %v1763, %v1763
        %v1780 = vpack.c.b16 %v1764, %v1764
        %v1781 = vpack.c.b16 %v1765, %v1765
        %v1782 = vpack.c.b16 %v1766, %v1766
        %v1783 = vpack.c.b16 %v1767, %v1767
        %v1784 = vpack.c.b16 %v1768, %v1768
        %1801 = vst [vmem:[%s338] sm:$0xf] %v1769
        %1802 = vst [vmem:[%s338 + $0x4] sm:$0xf] %v1770
        %1803 = vst [vmem:[%s338 + $0x8] sm:$0xf] %v1771
        %1804 = vst [vmem:[%s338 + $0xc] sm:$0xf] %v1772
        %1805 = vst [vmem:[%s338 + $0x10] sm:$0xf] %v1773
        %1806 = vst [vmem:[%s338 + $0x14] sm:$0xf] %v1774
        %1807 = vst [vmem:[%s338 + $0x18] sm:$0xf] %v1775
        %1808 = vst [vmem:[%s338 + $0x1c] sm:$0xf] %v1776
        %1809 = vst [vmem:[%s338 + $0x20] sm:$0xf] %v1777
        %1810 = vst [vmem:[%s338 + $0x24] sm:$0xf] %v1778
        %1811 = vst [vmem:[%s338 + $0x28] sm:$0xf] %v1779
        %1812 = vst [vmem:[%s338 + $0x2c] sm:$0xf] %v1780
        %1813 = vst [vmem:[%s338 + $0x30] sm:$0xf] %v1781
        %1814 = vst [vmem:[%s338 + $0x34] sm:$0xf] %v1782
        %1815 = vst [vmem:[%s338 + $0x38] sm:$0xf] %v1783
        %1816 = vst [vmem:[%s338 + $0x3c] sm:$0xf] %v1784
        %v1825 = vunpack.c.l.b16 %v1698
        %v1826 = vunpack.c.h.b16 %v1698
        %v1827 = vunpack.c.l.b16 %v1704
        %v1828 = vunpack.c.h.b16 %v1704
        %v1829 = vunpack.c.l.b16 %v1710
        %v1830 = vunpack.c.h.b16 %v1710
        %v1831 = vunpack.c.l.b16 %v1716
        %v1832 = vunpack.c.h.b16 %v1716
        %v1833 = vunpack.c.l.b16 %v1722
        %v1834 = vunpack.c.h.b16 %v1722
        %v1835 = vunpack.c.l.b16 %v1728
        %v1836 = vunpack.c.h.b16 %v1728
        %v1837 = vunpack.c.l.b16 %v1734
        %v1838 = vunpack.c.h.b16 %v1734
        %v1839 = vunpack.c.l.b16 %v1740
        %v1840 = vunpack.c.h.b16 %v1740
        %v1841 = vpack.c.b16 %v1825, %v1825
        %v1842 = vpack.c.b16 %v1826, %v1826
        %v1843 = vpack.c.b16 %v1827, %v1827
        %v1844 = vpack.c.b16 %v1828, %v1828
        %v1845 = vpack.c.b16 %v1829, %v1829
        %v1846 = vpack.c.b16 %v1830, %v1830
        %v1847 = vpack.c.b16 %v1831, %v1831
        %v1848 = vpack.c.b16 %v1832, %v1832
        %v1849 = vpack.c.b16 %v1833, %v1833
        %v1850 = vpack.c.b16 %v1834, %v1834
        %v1851 = vpack.c.b16 %v1835, %v1835
        %v1852 = vpack.c.b16 %v1836, %v1836
        %v1853 = vpack.c.b16 %v1837, %v1837
        %v1854 = vpack.c.b16 %v1838, %v1838
        %v1855 = vpack.c.b16 %v1839, %v1839
        %v1856 = vpack.c.b16 %v1840, %v1840
        %s1873 = scalar_lea.vmem %s338, 64 [#allocation7]
        %1874 = vst [vmem:[%s1873] sm:$0xf] %v1841
        %1875 = vst [vmem:[%s1873 + $0x4] sm:$0xf] %v1842
        %1876 = vst [vmem:[%s1873 + $0x8] sm:$0xf] %v1843
        %1877 = vst [vmem:[%s1873 + $0xc] sm:$0xf] %v1844
        %1878 = vst [vmem:[%s1873 + $0x10] sm:$0xf] %v1845
        %1879 = vst [vmem:[%s1873 + $0x14] sm:$0xf] %v1846
        %1880 = vst [vmem:[%s1873 + $0x18] sm:$0xf] %v1847
        %1881 = vst [vmem:[%s1873 + $0x1c] sm:$0xf] %v1848
        %1882 = vst [vmem:[%s1873 + $0x20] sm:$0xf] %v1849
        %1883 = vst [vmem:[%s1873 + $0x24] sm:$0xf] %v1850
        %1884 = vst [vmem:[%s1873 + $0x28] sm:$0xf] %v1851
        %1885 = vst [vmem:[%s1873 + $0x2c] sm:$0xf] %v1852
        %1886 = vst [vmem:[%s1873 + $0x30] sm:$0xf] %v1853
        %1887 = vst [vmem:[%s1873 + $0x34] sm:$0xf] %v1854
        %1888 = vst [vmem:[%s1873 + $0x38] sm:$0xf] %v1855
        %1889 = vst [vmem:[%s1873 + $0x3c] sm:$0xf] %v1856
        %v1898 = vunpack.c.l.b16 %v1699
        %v1899 = vunpack.c.h.b16 %v1699
        %v1900 = vunpack.c.l.b16 %v1705
        %v1901 = vunpack.c.h.b16 %v1705
        %v1902 = vunpack.c.l.b16 %v1711
        %v1903 = vunpack.c.h.b16 %v1711
        %v1904 = vunpack.c.l.b16 %v1717
        %v1905 = vunpack.c.h.b16 %v1717
        %v1906 = vunpack.c.l.b16 %v1723
        %v1907 = vunpack.c.h.b16 %v1723
        %v1908 = vunpack.c.l.b16 %v1729
        %v1909 = vunpack.c.h.b16 %v1729
        %v1910 = vunpack.c.l.b16 %v1735
        %v1911 = vunpack.c.h.b16 %v1735
        %v1912 = vunpack.c.l.b16 %v1741
        %v1913 = vunpack.c.h.b16 %v1741
        %v1914 = vpack.c.b16 %v1898, %v1898
        %v1915 = vpack.c.b16 %v1899, %v1899
        %v1916 = vpack.c.b16 %v1900, %v1900
        %v1917 = vpack.c.b16 %v1901, %v1901
        %v1918 = vpack.c.b16 %v1902, %v1902
        %v1919 = vpack.c.b16 %v1903, %v1903
        %v1920 = vpack.c.b16 %v1904, %v1904
        %v1921 = vpack.c.b16 %v1905, %v1905
        %v1922 = vpack.c.b16 %v1906, %v1906
        %v1923 = vpack.c.b16 %v1907, %v1907
        %v1924 = vpack.c.b16 %v1908, %v1908
        %v1925 = vpack.c.b16 %v1909, %v1909
        %v1926 = vpack.c.b16 %v1910, %v1910
        %v1927 = vpack.c.b16 %v1911, %v1911
        %v1928 = vpack.c.b16 %v1912, %v1912
        %v1929 = vpack.c.b16 %v1913, %v1913
        %1946 = vst [vmem:[%s345] sm:$0xf] %v1914
        %1947 = vst [vmem:[%s345 + $0x4] sm:$0xf] %v1915
        %1948 = vst [vmem:[%s345 + $0x8] sm:$0xf] %v1916
        %1949 = vst [vmem:[%s345 + $0xc] sm:$0xf] %v1917
        %1950 = vst [vmem:[%s345 + $0x10] sm:$0xf] %v1918
        %1951 = vst [vmem:[%s345 + $0x14] sm:$0xf] %v1919
        %1952 = vst [vmem:[%s345 + $0x18] sm:$0xf] %v1920
        %1953 = vst [vmem:[%s345 + $0x1c] sm:$0xf] %v1921
        %1954 = vst [vmem:[%s345 + $0x20] sm:$0xf] %v1922
        %1955 = vst [vmem:[%s345 + $0x24] sm:$0xf] %v1923
        %1956 = vst [vmem:[%s345 + $0x28] sm:$0xf] %v1924
        %1957 = vst [vmem:[%s345 + $0x2c] sm:$0xf] %v1925
        %1958 = vst [vmem:[%s345 + $0x30] sm:$0xf] %v1926
        %1959 = vst [vmem:[%s345 + $0x34] sm:$0xf] %v1927
        %1960 = vst [vmem:[%s345 + $0x38] sm:$0xf] %v1928
        %1961 = vst [vmem:[%s345 + $0x3c] sm:$0xf] %v1929
        %v1970 = vunpack.c.l.b16 %v1700
        %v1971 = vunpack.c.h.b16 %v1700
        %v1972 = vunpack.c.l.b16 %v1706
        %v1973 = vunpack.c.h.b16 %v1706
        %v1974 = vunpack.c.l.b16 %v1712
        %v1975 = vunpack.c.h.b16 %v1712
        %v1976 = vunpack.c.l.b16 %v1718
        %v1977 = vunpack.c.h.b16 %v1718
        %v1978 = vunpack.c.l.b16 %v1724
        %v1979 = vunpack.c.h.b16 %v1724
        %v1980 = vunpack.c.l.b16 %v1730
        %v1981 = vunpack.c.h.b16 %v1730
        %v1982 = vunpack.c.l.b16 %v1736
        %v1983 = vunpack.c.h.b16 %v1736
        %v1984 = vunpack.c.l.b16 %v1742
        %v1985 = vunpack.c.h.b16 %v1742
        %v1986 = vpack.c.b16 %v1970, %v1970
        %v1987 = vpack.c.b16 %v1971, %v1971
        %v1988 = vpack.c.b16 %v1972, %v1972
        %v1989 = vpack.c.b16 %v1973, %v1973
        %v1990 = vpack.c.b16 %v1974, %v1974
        %v1991 = vpack.c.b16 %v1975, %v1975
        %v1992 = vpack.c.b16 %v1976, %v1976
        %v1993 = vpack.c.b16 %v1977, %v1977
        %v1994 = vpack.c.b16 %v1978, %v1978
        %v1995 = vpack.c.b16 %v1979, %v1979
        %v1996 = vpack.c.b16 %v1980, %v1980
        %v1997 = vpack.c.b16 %v1981, %v1981
        %v1998 = vpack.c.b16 %v1982, %v1982
        %v1999 = vpack.c.b16 %v1983, %v1983
        %v2000 = vpack.c.b16 %v1984, %v1984
        %v2001 = vpack.c.b16 %v1985, %v1985
        %s2018 = scalar_lea.vmem %s345, 64 [#allocation8]
        %2019 = vst [vmem:[%s2018] sm:$0xf] %v1986
        %2020 = vst [vmem:[%s2018 + $0x4] sm:$0xf] %v1987
        %2021 = vst [vmem:[%s2018 + $0x8] sm:$0xf] %v1988
        %2022 = vst [vmem:[%s2018 + $0xc] sm:$0xf] %v1989
        %2023 = vst [vmem:[%s2018 + $0x10] sm:$0xf] %v1990
        %2024 = vst [vmem:[%s2018 + $0x14] sm:$0xf] %v1991
        %2025 = vst [vmem:[%s2018 + $0x18] sm:$0xf] %v1992
        %2026 = vst [vmem:[%s2018 + $0x1c] sm:$0xf] %v1993
        %2027 = vst [vmem:[%s2018 + $0x20] sm:$0xf] %v1994
        %2028 = vst [vmem:[%s2018 + $0x24] sm:$0xf] %v1995
        %2029 = vst [vmem:[%s2018 + $0x28] sm:$0xf] %v1996
        %2030 = vst [vmem:[%s2018 + $0x2c] sm:$0xf] %v1997
        %2031 = vst [vmem:[%s2018 + $0x30] sm:$0xf] %v1998
        %2032 = vst [vmem:[%s2018 + $0x34] sm:$0xf] %v1999
        %2033 = vst [vmem:[%s2018 + $0x38] sm:$0xf] %v2000
        %2034 = vst [vmem:[%s2018 + $0x3c] sm:$0xf] %v2001
        %v2043 = vunpack.c.l.b16 %v1701
        %v2044 = vunpack.c.h.b16 %v1701
        %v2045 = vunpack.c.l.b16 %v1707
        %v2046 = vunpack.c.h.b16 %v1707
        %v2047 = vunpack.c.l.b16 %v1713
        %v2048 = vunpack.c.h.b16 %v1713
        %v2049 = vunpack.c.l.b16 %v1719
        %v2050 = vunpack.c.h.b16 %v1719
        %v2051 = vunpack.c.l.b16 %v1725
        %v2052 = vunpack.c.h.b16 %v1725
        %v2053 = vunpack.c.l.b16 %v1731
        %v2054 = vunpack.c.h.b16 %v1731
        %v2055 = vunpack.c.l.b16 %v1737
        %v2056 = vunpack.c.h.b16 %v1737
        %v2057 = vunpack.c.l.b16 %v1743
        %v2058 = vunpack.c.h.b16 %v1743
        %v2059 = vpack.c.b16 %v2043, %v2043
        %v2060 = vpack.c.b16 %v2044, %v2044
        %v2061 = vpack.c.b16 %v2045, %v2045
        %v2062 = vpack.c.b16 %v2046, %v2046
        %v2063 = vpack.c.b16 %v2047, %v2047
        %v2064 = vpack.c.b16 %v2048, %v2048
        %v2065 = vpack.c.b16 %v2049, %v2049
        %v2066 = vpack.c.b16 %v2050, %v2050
        %v2067 = vpack.c.b16 %v2051, %v2051
        %v2068 = vpack.c.b16 %v2052, %v2052
        %v2069 = vpack.c.b16 %v2053, %v2053
        %v2070 = vpack.c.b16 %v2054, %v2054
        %v2071 = vpack.c.b16 %v2055, %v2055
        %v2072 = vpack.c.b16 %v2056, %v2056
        %v2073 = vpack.c.b16 %v2057, %v2057
        %v2074 = vpack.c.b16 %v2058, %v2058
        %2091 = vst [vmem:[%s352] sm:$0xf] %v2059
        %2092 = vst [vmem:[%s352 + $0x4] sm:$0xf] %v2060
        %2093 = vst [vmem:[%s352 + $0x8] sm:$0xf] %v2061
        %2094 = vst [vmem:[%s352 + $0xc] sm:$0xf] %v2062
        %2095 = vst [vmem:[%s352 + $0x10] sm:$0xf] %v2063
        %2096 = vst [vmem:[%s352 + $0x14] sm:$0xf] %v2064
        %2097 = vst [vmem:[%s352 + $0x18] sm:$0xf] %v2065
        %2098 = vst [vmem:[%s352 + $0x1c] sm:$0xf] %v2066
        %2099 = vst [vmem:[%s352 + $0x20] sm:$0xf] %v2067
        %2100 = vst [vmem:[%s352 + $0x24] sm:$0xf] %v2068
        %2101 = vst [vmem:[%s352 + $0x28] sm:$0xf] %v2069
        %2102 = vst [vmem:[%s352 + $0x2c] sm:$0xf] %v2070
        %2103 = vst [vmem:[%s352 + $0x30] sm:$0xf] %v2071
        %2104 = vst [vmem:[%s352 + $0x34] sm:$0xf] %v2072
        %2105 = vst [vmem:[%s352 + $0x38] sm:$0xf] %v2073
        %2106 = vst [vmem:[%s352 + $0x3c] sm:$0xf] %v2074
        %v2115 = vunpack.c.l.b16 %v1702
        %v2116 = vunpack.c.h.b16 %v1702
        %v2117 = vunpack.c.l.b16 %v1708
        %v2118 = vunpack.c.h.b16 %v1708
        %v2119 = vunpack.c.l.b16 %v1714
        %v2120 = vunpack.c.h.b16 %v1714
        %v2121 = vunpack.c.l.b16 %v1720
        %v2122 = vunpack.c.h.b16 %v1720
        %v2123 = vunpack.c.l.b16 %v1726
        %v2124 = vunpack.c.h.b16 %v1726
        %v2125 = vunpack.c.l.b16 %v1732
        %v2126 = vunpack.c.h.b16 %v1732
        %v2127 = vunpack.c.l.b16 %v1738
        %v2128 = vunpack.c.h.b16 %v1738
        %v2129 = vunpack.c.l.b16 %v1744
        %v2130 = vunpack.c.h.b16 %v1744
        %v2131 = vpack.c.b16 %v2115, %v2115
        %v2132 = vpack.c.b16 %v2116, %v2116
        %v2133 = vpack.c.b16 %v2117, %v2117
        %v2134 = vpack.c.b16 %v2118, %v2118
        %v2135 = vpack.c.b16 %v2119, %v2119
        %v2136 = vpack.c.b16 %v2120, %v2120
        %v2137 = vpack.c.b16 %v2121, %v2121
        %v2138 = vpack.c.b16 %v2122, %v2122
        %v2139 = vpack.c.b16 %v2123, %v2123
        %v2140 = vpack.c.b16 %v2124, %v2124
        %v2141 = vpack.c.b16 %v2125, %v2125
        %v2142 = vpack.c.b16 %v2126, %v2126
        %v2143 = vpack.c.b16 %v2127, %v2127
        %v2144 = vpack.c.b16 %v2128, %v2128
        %v2145 = vpack.c.b16 %v2129, %v2129
        %v2146 = vpack.c.b16 %v2130, %v2130
        %s2163 = scalar_lea.vmem %s352, 64 [#allocation10]
        %2164 = vst [vmem:[%s2163] sm:$0xf] %v2131
        %2165 = vst [vmem:[%s2163 + $0x4] sm:$0xf] %v2132
        %2166 = vst [vmem:[%s2163 + $0x8] sm:$0xf] %v2133
        %2167 = vst [vmem:[%s2163 + $0xc] sm:$0xf] %v2134
        %2168 = vst [vmem:[%s2163 + $0x10] sm:$0xf] %v2135
        %2169 = vst [vmem:[%s2163 + $0x14] sm:$0xf] %v2136
        %2170 = vst [vmem:[%s2163 + $0x18] sm:$0xf] %v2137
        %2171 = vst [vmem:[%s2163 + $0x1c] sm:$0xf] %v2138
        %2172 = vst [vmem:[%s2163 + $0x20] sm:$0xf] %v2139
        %2173 = vst [vmem:[%s2163 + $0x24] sm:$0xf] %v2140
        %2174 = vst [vmem:[%s2163 + $0x28] sm:$0xf] %v2141
        %2175 = vst [vmem:[%s2163 + $0x2c] sm:$0xf] %v2142
        %2176 = vst [vmem:[%s2163 + $0x30] sm:$0xf] %v2143
        %2177 = vst [vmem:[%s2163 + $0x34] sm:$0xf] %v2144
        %2178 = vst [vmem:[%s2163 + $0x38] sm:$0xf] %v2145
        %2179 = vst [vmem:[%s2163 + $0x3c] sm:$0xf] %v2146
        %s2180 = sand.u32 %s163, 1
        %s2181 = scalar_lea.sflag [#allocation4], %s2180
        %s2182 = sand.u32 %s163, 1
        %s2183 = smul.addr %s2182, 128
        %s2184 = scalar_lea.vmem [#allocation7], %s2183
        %s2185 = sand.u32 %s29, 1
        %s2186 = scalar_lea.sflag [#allocation9], %s2185
        %s2187 = sand.u32 %s191, 1
        %s2188 = smul.addr %s2187, 128
        %s2189 = scalar_lea.vmem [#allocation8], %s2188
        %s2190 = sand.u32 %s29, 1
        %s2191 = scalar_lea.sflag [#allocation9], %s2190
        %s2192 = sand.u32 %s219, 1
        %s2193 = smul.addr %s2192, 128
        %s2194 = scalar_lea.vmem [#allocation10], %s2193
        // Predicated region
        $region49: #{tpu_custom_call.1} parent=39 // pred_check
          %p2195 = pneg %p173
        $region50: #{tpu_custom_call.1} parent=39 // pred_check_branch
          %2197 = sbr.rel (%p2195) target = $region52
        $region51: #{tpu_custom_call.1} parent=39 // pred_region
          #allocation12 [shape = 'u32[6]{0}', space=smem, size = 0x18, scoped, tag = 'DMA stride descriptor']
          %s2198 = smul.u32 16, %s34
          %s2200 = ssub.s32 2048, 2048
          %2201 = vsyncadd %s2181, %s2200
          %s2202 = smul.addr %s33, 64
          %s2203 = sadd.s32 %s2198, %s2202
          %s2204 = smul.addr %s2203, 64
          %s2205 = scalar_lea.hbm %s5, %s2204
          %s2207 = sshll.u32 1, 14
          %s2208 = sxor.u32 4294967295, %s2207
          %s2211 = sshll.u32 7, 18
          %s2212 = sxor.u32 4294967295, %s2211
          %s2213 = sand.u32 0, %s2212
          %s2215 = sor.u32 %s2213, 0
          %s2217 = sshll.u32 3, 24
          %s2218 = sxor.u32 4294967295, %s2217
          %s2219 = sand.u32 %s2215, %s2218
          %s2221 = sor.u32 %s2219, 0
          %s2222 = sshll.u32 %s2184, 4
          %s2223 = int_to_ptr.vmem [resolvable:$true] %s2222
          %2229 = sst [smem:[#allocation12]] 1024
          %s2230 = scalar_lea.smem [#allocation12], 1
          %2231 = sst [smem:[%s2230]] 2048
          %s2232 = scalar_lea.smem [#allocation12], 2
          %2233 = sst [smem:[%s2232]] 16
          %s2234 = scalar_lea.smem [#allocation12], 3
          %2235 = sst [smem:[%s2234]] 64
          %s2236 = scalar_lea.smem [#allocation12], 4
          %2237 = sst [smem:[%s2236]] 64
          %s2238 = scalar_lea.smem [#allocation12], 5
          %2239 = sst [smem:[%s2238]] 4
          %2241 = dma.general %s2223, 2048, %s2205, %s2181, [#allocation11], [#allocation12], %s2221, 0
        $region52: #{tpu_custom_call.1} parent=39 // pred_fallthru
          _
        // Predicated region
        $region53: #{tpu_custom_call.1} parent=39 // pred_check
          %p2242 = pneg %p201
        $region54: #{tpu_custom_call.1} parent=39 // pred_check_branch
          %2244 = sbr.rel (%p2242) target = $region56
        $region55: #{tpu_custom_call.1} parent=39 // pred_region
          #allocation14 [shape = 'u32[6]{0}', space=smem, size = 0x18, scoped, tag = 'DMA stride descriptor']
          %s2245 = smul.u32 16, %s34
          %s2247 = ssub.s32 2048, 2048
          %2248 = vsyncadd %s2186, %s2247
          %s2249 = smul.addr %s33, 64
          %s2250 = sadd.s32 %s2245, %s2249
          %s2251 = smul.addr %s2250, 64
          %s2252 = scalar_lea.hbm %s6, %s2251
          %s2254 = sshll.u32 1, 14
          %s2255 = sxor.u32 4294967295, %s2254
          %s2258 = sshll.u32 7, 18
          %s2259 = sxor.u32 4294967295, %s2258
          %s2260 = sand.u32 0, %s2259
          %s2262 = sor.u32 %s2260, 0
          %s2264 = sshll.u32 3, 24
          %s2265 = sxor.u32 4294967295, %s2264
          %s2266 = sand.u32 %s2262, %s2265
          %s2268 = sor.u32 %s2266, 0
          %s2269 = sshll.u32 %s2189, 4
          %s2270 = int_to_ptr.vmem [resolvable:$true] %s2269
          %2276 = sst [smem:[#allocation14]] 1024
          %s2277 = scalar_lea.smem [#allocation14], 1
          %2278 = sst [smem:[%s2277]] 2048
          %s2279 = scalar_lea.smem [#allocation14], 2
          %2280 = sst [smem:[%s2279]] 16
          %s2281 = scalar_lea.smem [#allocation14], 3
          %2282 = sst [smem:[%s2281]] 64
          %s2283 = scalar_lea.smem [#allocation14], 4
          %2284 = sst [smem:[%s2283]] 64
          %s2285 = scalar_lea.smem [#allocation14], 5
          %2286 = sst [smem:[%s2285]] 4
          %2288 = dma.general %s2270, 2048, %s2252, %s2186, [#allocation13], [#allocation14], %s2268, 0
        $region56: #{tpu_custom_call.1} parent=39 // pred_fallthru
          _
        // Predicated region
        $region57: #{tpu_custom_call.1} parent=39 // pred_check
          %p2289 = pneg %p229
        $region58: #{tpu_custom_call.1} parent=39 // pred_check_branch
          %2291 = sbr.rel (%p2289) target = $region60
        $region59: #{tpu_custom_call.1} parent=39 // pred_region
          #allocation16 [shape = 'u32[6]{0}', space=smem, size = 0x18, scoped, tag = 'DMA stride descriptor']
          %s2292 = smul.u32 16, %s34
          %s2294 = ssub.s32 2048, 2048
          %2295 = vsyncadd %s2191, %s2294
          %s2296 = smul.addr %s33, 64
          %s2297 = sadd.s32 %s2292, %s2296
          %s2298 = smul.addr %s2297, 64
          %s2299 = scalar_lea.hbm %s7, %s2298
          %s2301 = sshll.u32 1, 14
          %s2302 = sxor.u32 4294967295, %s2301
          %s2305 = sshll.u32 7, 18
          %s2306 = sxor.u32 4294967295, %s2305
          %s2307 = sand.u32 0, %s2306
          %s2309 = sor.u32 %s2307, 0
          %s2311 = sshll.u32 3, 24
          %s2312 = sxor.u32 4294967295, %s2311
          %s2313 = sand.u32 %s2309, %s2312
          %s2315 = sor.u32 %s2313, 0
          %s2316 = sshll.u32 %s2194, 4
          %s2317 = int_to_ptr.vmem [resolvable:$true] %s2316
          %2323 = sst [smem:[#allocation16]] 1024
          %s2324 = scalar_lea.smem [#allocation16], 1
          %2325 = sst [smem:[%s2324]] 2048
          %s2326 = scalar_lea.smem [#allocation16], 2
          %2327 = sst [smem:[%s2326]] 16
          %s2328 = scalar_lea.smem [#allocation16], 3
          %2329 = sst [smem:[%s2328]] 64
          %s2330 = scalar_lea.smem [#allocation16], 4
          %2331 = sst [smem:[%s2330]] 64
          %s2332 = scalar_lea.smem [#allocation16], 5
          %2333 = sst [smem:[%s2332]] 4
          %2335 = dma.general %s2317, 2048, %s2299, %s2191, [#allocation15], [#allocation16], %s2315, 0
        $region60: #{tpu_custom_call.1} parent=39 // pred_fallthru
          _
      $region40: #{tpu_custom_call.1} parent=5 // pred_fallthru
        _
      %p2336 = scmp.le.s32.totalorder 2, %s24
      // Predicated region
      $region61: #{tpu_custom_call.1} parent=5 // pred_check
        %p2337 = pneg %p2336
      $region62: #{tpu_custom_call.1} parent=5 // pred_check_branch
        %2339 = sbr.rel (%p2337) target = $region64
      $region63: #{tpu_custom_call.1} parent=5 // pred_region
        %s2340 = ssub.s32 %s24, 2
        // Predicated region
        $region65: #{tpu_custom_call.1} parent=63 // pred_check
          %p2341 = pneg %p179
        $region66: #{tpu_custom_call.1} parent=63 // pred_check_branch
          %2343 = sbr.rel (%p2341) target = $region68
        $region67: #{tpu_custom_call.1} parent=63 // pred_region
          %s2344 = sand.u32 %s164, 1
          %s2345 = scalar_lea.sflag [#allocation4], %s2344
          %s2346 = sand.u32 %s164, 1
          %s2347 = smul.addr %s2346, 128
          %s2348 = scalar_lea.vmem [#allocation7], %s2347
          %2349 = dma.done %s2345, 2048
        $region68: #{tpu_custom_call.1} parent=63 // pred_fallthru
          _
        // Predicated region
        $region69: #{tpu_custom_call.1} parent=63 // pred_check
          %p2350 = pneg %p207
        $region70: #{tpu_custom_call.1} parent=63 // pred_check_branch
          %2352 = sbr.rel (%p2350) target = $region72
        $region71: #{tpu_custom_call.1} parent=63 // pred_region
          %s2353 = sand.u32 %s30, 1
          %s2354 = scalar_lea.sflag [#allocation9], %s2353
          %s2355 = sand.u32 %s192, 1
          %s2356 = smul.addr %s2355, 128
          %s2357 = scalar_lea.vmem [#allocation8], %s2356
          %2358 = dma.done %s2354, 2048
        $region72: #{tpu_custom_call.1} parent=63 // pred_fallthru
          _
        // Predicated region
        $region73: #{tpu_custom_call.1} parent=63 // pred_check
          %p2359 = pneg %p235
        $region74: #{tpu_custom_call.1} parent=63 // pred_check_branch
          %2361 = sbr.rel (%p2359) target = $region76
        $region75: #{tpu_custom_call.1} parent=63 // pred_region
          %s2362 = sand.u32 %s30, 1
          %s2363 = scalar_lea.sflag [#allocation9], %s2362
          %s2364 = sand.u32 %s220, 1
          %s2365 = smul.addr %s2364, 128
          %s2366 = scalar_lea.vmem [#allocation10], %s2365
          %2367 = dma.done %s2363, 2048
        $region76: #{tpu_custom_call.1} parent=63 // pred_fallthru
          _
      $region64: #{tpu_custom_call.1} parent=5 // pred_fallthru
        _
    $region6: #{tpu_custom_call.1} parent=1 // loop_footer
      %s28 = sadd.s32 1, %s24
    $region7: #{tpu_custom_call.1} parent=1 // loop_footer_branch
      %23 = sbr.rel target = $region3
    $region8: #{tpu_custom_call.1} parent=1 // loop_exit
      _
    %2368 = vsyncpa [#allocation3], 1
    %s2369 = scalar_lea.sflag [#allocation3], 1
    %2370 = vsyncpa %s2369, 1
    %2371 = vsyncpa [#allocation6], 1
    %2372 = vsyncpa [#allocation4], 1
    %s2373 = scalar_lea.sflag [#allocation4], 1
    %2374 = vsyncpa %s2373, 1
    %2375 = vsyncpa [#allocation9], 1
    %s2376 = scalar_lea.sflag [#allocation9], 1
    %2377 = vsyncpa %s2376, 1

</llo_original>
